<compile_context>
chip_gen: v7x
topology: tpu7x:2x2x1
jax: 0.10.0
libtpu: 0.0.40
codegen_flags: <defaults>
</compile_context>

<pallas_src>
import jax
import jax.numpy as jnp
from jax.experimental import pallas as pl
from jax.experimental.pallas import tpu as pltpu

EMBED_DIM = 32      # backbone.embedding_dim
BOTTLENECK = 16     # bottle_neck_dim
BN_EPS = 1e-5
COS_EPS = 1e-8

# bf16 is exact for unweighted 0/1 adjacency.  For weighted / normalized
# adjacency (D^-1 A, attention weights, ...) flip this to jnp.float32 — the
# kernel, wrapper and reference all follow it consistently.
MXU_DTYPE = jnp.bfloat16

_VMEM = pl.BlockSpec(memory_space=pltpu.MemorySpace.VMEM)


# ----------------------------------------------------------------------------
# Backbone kernel — grid over (view, batch-block of TB graphs):
#   msg[g] = adj[g] @ feat[g]                       (batched, bf16 x bf16 -> f32)
#   h      = relu([TB*N, F] @ W)                    (one flattened MXU call)
#   z[g]   = sum_n h[g, n, :]                       (per-graph sum-pool)
# Each step writes its own [TB, E] output block directly — no revisit, no
# accumulator, no cross-step dependency.
# ----------------------------------------------------------------------------
def backbone_kernel(feat_ref, adj_ref, w_ref, z_ref):
    tb, n_nodes, n_feat = feat_ref.shape
    n_embed = w_ref.shape[1]

    # Per-graph message passing on the MXU (bf16 operands, f32 accumulation).
    msg = jnp.einsum(
        "gnm,gmf->gnf", adj_ref[...], feat_ref[...],
        preferred_element_type=jnp.float32)                 # [TB, N, F] f32

    # Shared projection as a single flattened MXU call (W loaded once: its
    # index_map is constant across the grid).
    h = jnp.dot(
        msg.reshape(tb * n_nodes, n_feat).astype(w_ref.dtype),
        w_ref[...],
        preferred_element_type=jnp.float32)                 # [TB*N, E] f32
    h = jnp.maximum(h, 0.0).reshape(tb, n_nodes, n_embed)

    # Per-graph sum-pool -> direct write of this step's output block.
    z_ref[...] = jnp.sum(h, axis=1)                         # [TB, E]


def _pick_tb(batch, n_nodes, n_feat, vmem_tile_budget=24 * 1024 * 1024):
    """Largest TB dividing `batch` (multiple of 8, or == batch) whose
    double-buffered bf16 adj+feat tiles fit the VMEM budget (v7x-safe)."""
    cands = [t for t in range(batch, 0, -1)
             if batch % t == 0 and (t % 8 == 0 or t == batch)]
    for t in cands:
        tile_bytes = 2 * t * n_nodes * (n_nodes + n_feat) * 2   # 2 bufs, bf16
        if tile_bytes <= vmem_tile_budget:
            return t
    return cands[-1]


def backbone_forward(feat, adj, w, *, tb=None):
    """feat: [2, B, N, F] bf16, adj: [2, B, N, N] bf16, w: [F, E] bf16
       -> z: [2, B, E] f32."""
    nviews, nbatch, n_nodes, n_feat = feat.shape
    n_embed = w.shape[1]
    if tb is None:
        tb = _pick_tb(nbatch, n_nodes, n_feat)
    assert nbatch % tb == 0

    return pl.pallas_call(
        backbone_kernel,
        out_shape=jax.ShapeDtypeStruct((nviews, nbatch, n_embed), jnp.float32),
        grid_spec=pltpu.PrefetchScalarGridSpec(
            num_scalar_prefetch=0,
            grid=(nviews, nbatch // tb),
            in_specs=[
                # per-step tiles of TB graphs (BlockSpec double-buffers them);
                # leading view dim squeezed out.
                pl.BlockSpec((None, tb, n_nodes, n_feat),
                             lambda v, b: (v, b, 0, 0)),
                pl.BlockSpec((None, tb, n_nodes, n_nodes),
                             lambda v, b: (v, b, 0, 0)),
                # weight resident for the whole grid (constant index_map).
                pl.BlockSpec((n_feat, n_embed), lambda v, b: (0, 0)),
            ],
            out_specs=pl.BlockSpec((None, tb, n_embed),
                                   lambda v, b: (v, b, 0)),
        ),
        compiler_params=pltpu.CompilerParams(
            # No output revisit -> both axes parallel (megacore can shard
            # over views x batch blocks on v7x; no-op on v5e/v6e).
            dimension_semantics=("parallel", "parallel"),
            # v7x (64 MiB physical VMEM) safe; v6e/v5e could go higher but the
            # 24 MiB tile budget above already keeps tiles comfortably inside.
            vmem_limit_bytes=48 * 1024 * 1024,
        ),
    )(feat, adj, w)


# ----------------------------------------------------------------------------
# SimSiam head kernel: bn_int -> predictor (Linear/BN/ReLU/Linear) -> loss D.
# Tiny (~B*32 floats): one launch, everything resident in VMEM.
# ----------------------------------------------------------------------------
def _batchnorm_train(x, gamma, beta):
    # PyTorch BatchNorm1d in training mode: batch stats, biased variance.
    mean = jnp.mean(x, axis=0, keepdims=True)
    var = jnp.mean((x - mean) ** 2, axis=0, keepdims=True)
    return (x - mean) * jax.lax.rsqrt(var + BN_EPS) * gamma + beta


def simsiam_head_kernel(z_ref,
                        g_int_ref, b_int_ref,
                        w1_ref, g_p_ref, b_p_ref,
                        w2_ref, b2_ref,
                        loss_ref):
    g_int = g_int_ref[...]
    b_int = b_int_ref[...]
    z1 = _batchnorm_train(z_ref[0], g_int, b_int)
    z2 = _batchnorm_train(z_ref[1], g_int, b_int)

    w1 = w1_ref[...]
    w2 = w2_ref[...]
    b2 = b2_ref[...]
    gp = g_p_ref[...]
    bp = b_p_ref[...]

    def predictor(z):
        t = jnp.dot(z, w1, preferred_element_type=jnp.float32)
        t = _batchnorm_train(t, gp, bp)
        t = jnp.maximum(t, 0.0)
        return jnp.dot(t, w2, preferred_element_type=jnp.float32) + b2

    p1 = predictor(z1)
    p2 = predictor(z2)

    def neg_cos_mean(p, z):
        pn = jnp.maximum(jnp.sqrt(jnp.sum(p * p, axis=-1, keepdims=True)),
                         COS_EPS)
        zn = jnp.maximum(jnp.sqrt(jnp.sum(z * z, axis=-1, keepdims=True)),
                         COS_EPS)
        cos = jnp.sum(p * z, axis=-1, keepdims=True) / (pn * zn)
        return -jnp.mean(cos, axis=0, keepdims=True)          # [1, 1]

    loss_ref[...] = (0.5 * neg_cos_mean(p1, z2)
                     + 0.5 * neg_cos_mean(p2, z1))


def simsiam_head(z, params):
    return pl.pallas_call(
        simsiam_head_kernel,
        out_shape=jax.ShapeDtypeStruct((1, 1), jnp.float32),
        in_specs=[_VMEM] * 8,
        out_specs=_VMEM,
    )(z,
      params["bn_int_gamma"], params["bn_int_beta"],
      params["pred_w1"], params["bn_p_gamma"], params["bn_p_beta"],
      params["pred_w2"], params["pred_b2"])


# ----------------------------------------------------------------------------
# Full SimSiam forward
# ----------------------------------------------------------------------------
def simsiam_forward_stacked(feat, adj, params):
    """feat: [2, B, N, F], adj: [2, B, N, N] — already stacked (and ideally
    already MXU_DTYPE, in which case the casts below are no-ops)."""
    feat = feat.astype(MXU_DTYPE)
    adj = adj.astype(MXU_DTYPE)
    w = params["backbone_w"].astype(MXU_DTYPE)
    z = backbone_forward(feat, adj, w)                         # [2, B, E] f32
    loss = simsiam_head(z, params)
    return loss[0, 0]


@jax.jit
def simsiam_forward(feat_1, adj_1, batch_n_graphs_1,
                    feat_2, adj_2, batch_n_graphs_2, params):
    del batch_n_graphs_1, batch_n_graphs_2  # dense-batched layout: not needed
    # jit fuses stack + cast into a single HBM pass; pipelines that can deliver
    # pre-stacked bf16 should call simsiam_forward_stacked directly.
    feat = jnp.stack([feat_1, feat_2]).astype(MXU_DTYPE)       # [2, B, N, F]
    adj = jnp.stack([adj_1, adj_2]).astype(MXU_DTYPE)          # [2, B, N, N]
    return simsiam_forward_stacked(feat, adj, params)


# ----------------------------------------------------------------------------
# Pure-JAX reference (sanity check) — mirrors the kernel's bf16 MXU precision.
# ----------------------------------------------------------------------------
def _ref_forward(feat_1, adj_1, feat_2, adj_2, p):
    w_bb = p["backbone_w"].astype(MXU_DTYPE)

    def bb(feat, adj):
        msg = jnp.einsum("bnm,bmf->bnf",
                         adj.astype(MXU_DTYPE), feat.astype(MXU_DTYPE),
                         preferred_element_type=jnp.float32)
        h = jnp.einsum("bnf,fe->bne", msg.astype(MXU_DTYPE), w_bb,
                       preferred_element_type=jnp.float32)
        return jnp.sum(jnp.maximum(h, 0.0), axis=1)

    def bn(x, g, b):
        m = x.mean(0, keepdims=True)
        v = ((x - m) ** 2).mean(0, keepdims=True)
        return (x - m) / jnp.sqrt(v + BN_EPS) * g + b

    def pred(z):
        t = jnp.maximum(bn(z @ p["pred_w1"], p["bn_p_gamma"], p["bn_p_beta"]),
                        0.0)
        return t @ p["pred_w2"] + p["pred_b2"]

    z1 = bn(bb(feat_1, adj_1), p["bn_int_gamma"], p["bn_int_beta"])
    z2 = bn(bb(feat_2, adj_2), p["bn_int_gamma"], p["bn_int_beta"])
    p1, p2 = pred(z1), pred(z2)

    def d(a, b):
        an = jnp.maximum(jnp.linalg.norm(a, axis=-1), COS_EPS)
        bn_ = jnp.maximum(jnp.linalg.norm(b, axis=-1), COS_EPS)
        return -jnp.mean(jnp.sum(a * b, -1) / (an * bn_))

    return 0.5 * d(p1, z2) + 0.5 * d(p2, z1)


if __name__ == "__main__":
    B, N, F = 16, 8, 16         # graphs per batch, nodes per graph, node feat dim
    key = jax.random.PRNGKey(0)
    k = jax.random.split(key, 8)

    feat_1 = jax.random.normal(k[0], (B, N, F), jnp.float32)
    feat_2 = jax.random.normal(k[1], (B, N, F), jnp.float32)
    adj_1 = (jax.random.uniform(k[2], (B, N, N)) > 0.5).astype(jnp.float32)
    adj_2 = (jax.random.uniform(k[3], (B, N, N)) > 0.5).astype(jnp.float32)
    batch_n_graphs = B

    params = {
        "backbone_w": jax.random.normal(k[4], (F, EMBED_DIM)) * 0.1,
        "bn_int_gamma": jnp.ones((1, EMBED_DIM), jnp.float32),
        "bn_int_beta": jnp.zeros((1, EMBED_DIM), jnp.float32),
        "pred_w1": jax.random.normal(k[5], (EMBED_DIM, BOTTLENECK)) * 0.1,
        "bn_p_gamma": jnp.ones((1, BOTTLENECK), jnp.float32),
        "bn_p_beta": jnp.zeros((1, BOTTLENECK), jnp.float32),
        "pred_w2": jax.random.normal(k[6], (BOTTLENECK, EMBED_DIM)) * 0.1,
        "pred_b2": jax.random.normal(k[7], (1, EMBED_DIM)) * 0.01,
    }
    params = {n: v.astype(jnp.float32) for n, v in params.items()}

    loss = simsiam_forward(feat_1, adj_1, batch_n_graphs,
                           feat_2, adj_2, batch_n_graphs, params)
    loss = jax.block_until_ready(loss)

    ref = _ref_forward(feat_1, adj_1, feat_2, adj_2, params)
    assert jnp.allclose(loss, ref, atol=1e-3, rtol=1e-3), (loss, ref)

    print("KERNEL_OK")
</pallas_src>

<mosaic_0001>
module attributes {stable_mosaic.version = 11 : i64} {
  func.func @backbone_kernel(%arg0: i32, %arg1: i32, %arg2: memref<1x16x8x16xbf16, #tpu.memory_space<vmem>>, %arg3: memref<1x16x8x8xbf16, #tpu.memory_space<vmem>>, %arg4: memref<16x32xbf16, #tpu.memory_space<vmem>>, %arg5: memref<1x16x32xf32, #tpu.memory_space<vmem>>) attributes {dimension_semantics = [#tpu.dimension_semantics<parallel>, #tpu.dimension_semantics<parallel>], iteration_bounds = array<i64: 2, 1>, scalar_prefetch = 0 : i64, scratch_operands = 0 : i64, tpu.core_type = #tpu.core_type<tc>, window_params = [{transform_indices = @transform_0, window_bounds = array<i64: 1, 16, 8, 16>}, {transform_indices = @transform_1, window_bounds = array<i64: 1, 16, 8, 8>}, {pipeline_mode = #tpu.pipeline_mode<synchronous>, transform_indices = @transform_2, window_bounds = array<i64: 16, 32>}, {transform_indices = @transform_3, window_bounds = array<i64: 1, 16, 32>}]} {
    %c0 = arith.constant 0 : index
    %c0_0 = arith.constant 0 : index
    %c0_1 = arith.constant 0 : index
    %c0_2 = arith.constant 0 : index
    %0 = vector.load %arg3[%c0, %c0_0, %c0_1, %c0_2] : memref<1x16x8x8xbf16, #tpu.memory_space<vmem>>, vector<1x16x8x8xbf16>
    %1 = vector.shape_cast %0 : vector<1x16x8x8xbf16> to vector<16x8x8xbf16>
    %c0_3 = arith.constant 0 : index
    %c0_4 = arith.constant 0 : index
    %c0_5 = arith.constant 0 : index
    %c0_6 = arith.constant 0 : index
    %2 = vector.load %arg2[%c0_3, %c0_4, %c0_5, %c0_6] : memref<1x16x8x16xbf16, #tpu.memory_space<vmem>>, vector<1x16x8x16xbf16>
    %3 = vector.shape_cast %2 : vector<1x16x8x16xbf16> to vector<16x8x16xbf16>
    "tpu.trace_start"() <{level = 10 : i32, message = "gnm,gmf->gnf"}> : () -> ()
    %cst = arith.constant dense<0.000000e+00> : vector<16x8x16xf32>
    %4 = tpu.matmul %1, %3, %cst {dimension_numbers = #tpu.dot_dimension_numbers<[2], [1], [1], [2], [0, 0, 0, 1, 1, 2], [0], [0]>} : vector<16x8x8xbf16>, vector<16x8x16xbf16>, vector<16x8x16xf32> -> vector<16x8x16xf32>
    "tpu.trace_stop"() : () -> ()
    %5 = vector.shape_cast %4 : vector<16x8x16xf32> to vector<128x16xf32>
    %6 = arith.truncf %5 : vector<128x16xf32> to vector<128x16xbf16>
    %c0_7 = arith.constant 0 : index
    %c0_8 = arith.constant 0 : index
    %7 = vector.load %arg4[%c0_7, %c0_8] : memref<16x32xbf16, #tpu.memory_space<vmem>>, vector<16x32xbf16>
    %cst_9 = arith.constant dense<0.000000e+00> : vector<128x32xf32>
    %8 = tpu.matmul %6, %7, %cst_9 {dimension_numbers = #tpu.dot_dimension_numbers<[1], [0], [0], [1], [0, 0, 1, 1], [], []>} : vector<128x16xbf16>, vector<16x32xbf16>, vector<128x32xf32> -> vector<128x32xf32>
    %cst_10 = arith.constant 0.000000e+00 : f32
    %9 = vector.broadcast %cst_10 : f32 to vector<128x32xf32>
    %10 = arith.maximumf %8, %9 : vector<128x32xf32>
    %11 = vector.shape_cast %10 : vector<128x32xf32> to vector<16x8x32xf32>
    %cst_11 = arith.constant dense<0.000000e+00> : vector<16x32xf32>
    %12 = vector.multi_reduction <add>, %11, %cst_11 [1] : vector<16x8x32xf32> to vector<16x32xf32>
    %c0_12 = arith.constant 0 : index
    %c0_13 = arith.constant 0 : index
    %c0_14 = arith.constant 0 : index
    %13 = vector.load %arg5[%c0_12, %c0_13, %c0_14] : memref<1x16x32xf32, #tpu.memory_space<vmem>>, vector<1x16x32xf32>
    %14 = vector.shape_cast %13 : vector<1x16x32xf32> to vector<16x32xf32>
    %15 = vector.shape_cast %12 : vector<16x32xf32> to vector<1x16x32xf32>
    tpu.vector_store %arg5[%c0_12, %c0_13, %c0_14], %15 {strides = array<i32>} : memref<1x16x32xf32, #tpu.memory_space<vmem>>, vector<1x16x32xf32>,
    return
  }
  func.func @transform_0(%arg0: i32, %arg1: i32) -> (i32, i32, i32, i32) {
    %c0_i32 = arith.constant 0 : i32
    %c0_i32_0 = arith.constant 0 : i32
    %c0_i32_1 = arith.constant 0 : i32
    return %arg0, %arg1, %c0_i32, %c0_i32_0 : i32, i32, i32, i32
  }
  func.func @transform_1(%arg0: i32, %arg1: i32) -> (i32, i32, i32, i32) {
    %c0_i32 = arith.constant 0 : i32
    %c0_i32_0 = arith.constant 0 : i32
    %c0_i32_1 = arith.constant 0 : i32
    return %arg0, %arg1, %c0_i32, %c0_i32_0 : i32, i32, i32, i32
  }
  func.func @transform_2(%arg0: i32, %arg1: i32) -> (i32, i32) {
    %c0_i32 = arith.constant 0 : i32
    %c0_i32_0 = arith.constant 0 : i32
    %c0_i32_1 = arith.constant 0 : i32
    return %c0_i32, %c0_i32_0 : i32, i32
  }
  func.func @transform_3(%arg0: i32, %arg1: i32) -> (i32, i32, i32) {
    %c0_i32 = arith.constant 0 : i32
    %c0_i32_0 = arith.constant 0 : i32
    return %arg0, %arg1, %c0_i32 : i32, i32, i32
  }
}

module attributes {stable_mosaic.version = 11 : i64} {
  func.func @simsiam_head_kernel(%arg0: memref<2x16x32xf32, #tpu.memory_space<vmem>>, %arg1: memref<1x32xf32, #tpu.memory_space<vmem>>, %arg2: memref<1x32xf32, #tpu.memory_space<vmem>>, %arg3: memref<32x16xf32, #tpu.memory_space<vmem>>, %arg4: memref<1x16xf32, #tpu.memory_space<vmem>>, %arg5: memref<1x16xf32, #tpu.memory_space<vmem>>, %arg6: memref<16x32xf32, #tpu.memory_space<vmem>>, %arg7: memref<1x32xf32, #tpu.memory_space<vmem>>, %arg8: memref<1x1xf32, #tpu.memory_space<vmem>>) attributes {dimension_semantics = [], scalar_prefetch = 0 : i64, scratch_operands = 0 : i64, tpu.core_type = #tpu.core_type<tc>} {
    %c0 = arith.constant 0 : index
    %c0_0 = arith.constant 0 : index
    %0 = vector.load %arg1[%c0, %c0_0] : memref<1x32xf32, #tpu.memory_space<vmem>>, vector<1x32xf32>
    %c0_1 = arith.constant 0 : index
    %c0_2 = arith.constant 0 : index
    %1 = vector.load %arg2[%c0_1, %c0_2] : memref<1x32xf32, #tpu.memory_space<vmem>>, vector<1x32xf32>
    %c0_3 = arith.constant 0 : index
    %c0_4 = arith.constant 0 : index
    %c0_5 = arith.constant 0 : index
    %2 = vector.load %arg0[%c0_3, %c0_4, %c0_5] : memref<2x16x32xf32, #tpu.memory_space<vmem>>, vector<1x16x32xf32>
    %3 = vector.shape_cast %2 : vector<1x16x32xf32> to vector<16x32xf32>
    %cst = arith.constant dense<0.000000e+00> : vector<32xf32>
    %4 = vector.multi_reduction <add>, %3, %cst [0] : vector<16x32xf32> to vector<32xf32>
    %5 = vector.shape_cast %4 : vector<32xf32> to vector<1x32xf32>
    %cst_6 = arith.constant 1.600000e+01 : f32
    %6 = vector.broadcast %cst_6 : f32 to vector<1x32xf32>
    %7 = arith.divf %5, %6 : vector<1x32xf32>
    %8 = vector.broadcast %7 : vector<1x32xf32> to vector<16x32xf32>
    %9 = arith.subf %3, %8 : vector<16x32xf32>
    %10 = arith.mulf %9, %9 : vector<16x32xf32>
    %cst_7 = arith.constant dense<0.000000e+00> : vector<32xf32>
    %11 = vector.multi_reduction <add>, %10, %cst_7 [0] : vector<16x32xf32> to vector<32xf32>
    %12 = vector.shape_cast %11 : vector<32xf32> to vector<1x32xf32>
    %cst_8 = arith.constant 1.600000e+01 : f32
    %13 = vector.broadcast %cst_8 : f32 to vector<1x32xf32>
    %14 = arith.divf %12, %13 : vector<1x32xf32>
    %15 = vector.broadcast %7 : vector<1x32xf32> to vector<16x32xf32>
    %16 = arith.subf %3, %15 : vector<16x32xf32>
    %cst_9 = arith.constant 9.99999974E-6 : f32
    %17 = vector.broadcast %cst_9 : f32 to vector<1x32xf32>
    %18 = arith.addf %14, %17 : vector<1x32xf32>
    %19 = math.rsqrt %18 : vector<1x32xf32>
    %20 = vector.broadcast %19 : vector<1x32xf32> to vector<16x32xf32>
    %21 = arith.mulf %16, %20 : vector<16x32xf32>
    %22 = vector.broadcast %0 : vector<1x32xf32> to vector<16x32xf32>
    %23 = arith.mulf %21, %22 : vector<16x32xf32>
    %24 = vector.broadcast %1 : vector<1x32xf32> to vector<16x32xf32>
    %25 = arith.addf %23, %24 : vector<16x32xf32>
    %c1 = arith.constant 1 : index
    %c0_10 = arith.constant 0 : index
    %c0_11 = arith.constant 0 : index
    %26 = vector.load %arg0[%c1, %c0_10, %c0_11] : memref<2x16x32xf32, #tpu.memory_space<vmem>>, vector<1x16x32xf32>
    %27 = vector.shape_cast %26 : vector<1x16x32xf32> to vector<16x32xf32>
    %cst_12 = arith.constant dense<0.000000e+00> : vector<32xf32>
    %28 = vector.multi_reduction <add>, %27, %cst_12 [0] : vector<16x32xf32> to vector<32xf32>
    %29 = vector.shape_cast %28 : vector<32xf32> to vector<1x32xf32>
    %cst_13 = arith.constant 1.600000e+01 : f32
    %30 = vector.broadcast %cst_13 : f32 to vector<1x32xf32>
    %31 = arith.divf %29, %30 : vector<1x32xf32>
    %32 = vector.broadcast %31 : vector<1x32xf32> to vector<16x32xf32>
    %33 = arith.subf %27, %32 : vector<16x32xf32>
    %34 = arith.mulf %33, %33 : vector<16x32xf32>
    %cst_14 = arith.constant dense<0.000000e+00> : vector<32xf32>
    %35 = vector.multi_reduction <add>, %34, %cst_14 [0] : vector<16x32xf32> to vector<32xf32>
    %36 = vector.shape_cast %35 : vector<32xf32> to vector<1x32xf32>
    %cst_15 = arith.constant 1.600000e+01 : f32
    %37 = vector.broadcast %cst_15 : f32 to vector<1x32xf32>
    %38 = arith.divf %36, %37 : vector<1x32xf32>
    %39 = vector.broadcast %31 : vector<1x32xf32> to vector<16x32xf32>
    %40 = arith.subf %27, %39 : vector<16x32xf32>
    %cst_16 = arith.constant 9.99999974E-6 : f32
    %41 = vector.broadcast %cst_16 : f32 to vector<1x32xf32>
    %42 = arith.addf %38, %41 : vector<1x32xf32>
    %43 = math.rsqrt %42 : vector<1x32xf32>
    %44 = vector.broadcast %43 : vector<1x32xf32> to vector<16x32xf32>
    %45 = arith.mulf %40, %44 : vector<16x32xf32>
    %46 = vector.broadcast %0 : vector<1x32xf32> to vector<16x32xf32>
    %47 = arith.mulf %45, %46 : vector<16x32xf32>
    %48 = vector.broadcast %1 : vector<1x32xf32> to vector<16x32xf32>
    %49 = arith.addf %47, %48 : vector<16x32xf32>
    %c0_17 = arith.constant 0 : index
    %c0_18 = arith.constant 0 : index
    %50 = vector.load %arg3[%c0_17, %c0_18] : memref<32x16xf32, #tpu.memory_space<vmem>>, vector<32x16xf32>
    %c0_19 = arith.constant 0 : index
    %c0_20 = arith.constant 0 : index
    %51 = vector.load %arg6[%c0_19, %c0_20] : memref<16x32xf32, #tpu.memory_space<vmem>>, vector<16x32xf32>
    %c0_21 = arith.constant 0 : index
    %c0_22 = arith.constant 0 : index
    %52 = vector.load %arg7[%c0_21, %c0_22] : memref<1x32xf32, #tpu.memory_space<vmem>>, vector<1x32xf32>
    %c0_23 = arith.constant 0 : index
    %c0_24 = arith.constant 0 : index
    %53 = vector.load %arg4[%c0_23, %c0_24] : memref<1x16xf32, #tpu.memory_space<vmem>>, vector<1x16xf32>
    %c0_25 = arith.constant 0 : index
    %c0_26 = arith.constant 0 : index
    %54 = vector.load %arg5[%c0_25, %c0_26] : memref<1x16xf32, #tpu.memory_space<vmem>>, vector<1x16xf32>
    %cst_27 = arith.constant dense<0.000000e+00> : vector<16x16xf32>
    %55 = tpu.matmul %25, %50, %cst_27 {dimension_numbers = #tpu.dot_dimension_numbers<[1], [0], [0], [1], [0, 0, 1, 1], [], []>} : vector<16x32xf32>, vector<32x16xf32>, vector<16x16xf32> -> vector<16x16xf32>
    %cst_28 = arith.constant dense<0.000000e+00> : vector<16xf32>
    %56 = vector.multi_reduction <add>, %55, %cst_28 [0] : vector<16x16xf32> to vector<16xf32>
    %57 = vector.shape_cast %56 : vector<16xf32> to vector<1x16xf32>
    %cst_29 = arith.constant 1.600000e+01 : f32
    %58 = vector.broadcast %cst_29 : f32 to vector<1x16xf32>
    %59 = arith.divf %57, %58 : vector<1x16xf32>
    %60 = vector.broadcast %59 : vector<1x16xf32> to vector<16x16xf32>
    %61 = arith.subf %55, %60 : vector<16x16xf32>
    %62 = arith.mulf %61, %61 : vector<16x16xf32>
    %cst_30 = arith.constant dense<0.000000e+00> : vector<16xf32>
    %63 = vector.multi_reduction <add>, %62, %cst_30 [0] : vector<16x16xf32> to vector<16xf32>
    %64 = vector.shape_cast %63 : vector<16xf32> to vector<1x16xf32>
    %cst_31 = arith.constant 1.600000e+01 : f32
    %65 = vector.broadcast %cst_31 : f32 to vector<1x16xf32>
    %66 = arith.divf %64, %65 : vector<1x16xf32>
    %67 = vector.broadcast %59 : vector<1x16xf32> to vector<16x16xf32>
    %68 = arith.subf %55, %67 : vector<16x16xf32>
    %cst_32 = arith.constant 9.99999974E-6 : f32
    %69 = vector.broadcast %cst_32 : f32 to vector<1x16xf32>
    %70 = arith.addf %66, %69 : vector<1x16xf32>
    %71 = math.rsqrt %70 : vector<1x16xf32>
    %72 = vector.broadcast %71 : vector<1x16xf32> to vector<16x16xf32>
    %73 = arith.mulf %68, %72 : vector<16x16xf32>
    %74 = vector.broadcast %53 : vector<1x16xf32> to vector<16x16xf32>
    %75 = arith.mulf %73, %74 : vector<16x16xf32>
    %76 = vector.broadcast %54 : vector<1x16xf32> to vector<16x16xf32>
    %77 = arith.addf %75, %76 : vector<16x16xf32>
    %cst_33 = arith.constant 0.000000e+00 : f32
    %78 = vector.broadcast %cst_33 : f32 to vector<16x16xf32>
    %79 = arith.maximumf %77, %78 : vector<16x16xf32>
    %cst_34 = arith.constant dense<0.000000e+00> : vector<16x32xf32>
    %80 = tpu.matmul %79, %51, %cst_34 {dimension_numbers = #tpu.dot_dimension_numbers<[1], [0], [0], [1], [0, 0, 1, 1], [], []>} : vector<16x16xf32>, vector<16x32xf32>, vector<16x32xf32> -> vector<16x32xf32>
    %81 = vector.broadcast %52 : vector<1x32xf32> to vector<16x32xf32>
    %82 = arith.addf %80, %81 : vector<16x32xf32>
    %cst_35 = arith.constant dense<0.000000e+00> : vector<16x16xf32>
    %83 = tpu.matmul %49, %50, %cst_35 {dimension_numbers = #tpu.dot_dimension_numbers<[1], [0], [0], [1], [0, 0, 1, 1], [], []>} : vector<16x32xf32>, vector<32x16xf32>, vector<16x16xf32> -> vector<16x16xf32>
    %cst_36 = arith.constant dense<0.000000e+00> : vector<16xf32>
    %84 = vector.multi_reduction <add>, %83, %cst_36 [0] : vector<16x16xf32> to vector<16xf32>
    %85 = vector.shape_cast %84 : vector<16xf32> to vector<1x16xf32>
    %cst_37 = arith.constant 1.600000e+01 : f32
    %86 = vector.broadcast %cst_37 : f32 to vector<1x16xf32>
    %87 = arith.divf %85, %86 : vector<1x16xf32>
    %88 = vector.broadcast %87 : vector<1x16xf32> to vector<16x16xf32>
    %89 = arith.subf %83, %88 : vector<16x16xf32>
    %90 = arith.mulf %89, %89 : vector<16x16xf32>
    %cst_38 = arith.constant dense<0.000000e+00> : vector<16xf32>
    %91 = vector.multi_reduction <add>, %90, %cst_38 [0] : vector<16x16xf32> to vector<16xf32>
    %92 = vector.shape_cast %91 : vector<16xf32> to vector<1x16xf32>
    %cst_39 = arith.constant 1.600000e+01 : f32
    %93 = vector.broadcast %cst_39 : f32 to vector<1x16xf32>
    %94 = arith.divf %92, %93 : vector<1x16xf32>
    %95 = vector.broadcast %87 : vector<1x16xf32> to vector<16x16xf32>
    %96 = arith.subf %83, %95 : vector<16x16xf32>
    %cst_40 = arith.constant 9.99999974E-6 : f32
    %97 = vector.broadcast %cst_40 : f32 to vector<1x16xf32>
    %98 = arith.addf %94, %97 : vector<1x16xf32>
    %99 = math.rsqrt %98 : vector<1x16xf32>
    %100 = vector.broadcast %99 : vector<1x16xf32> to vector<16x16xf32>
    %101 = arith.mulf %96, %100 : vector<16x16xf32>
    %102 = vector.broadcast %53 : vector<1x16xf32> to vector<16x16xf32>
    %103 = arith.mulf %101, %102 : vector<16x16xf32>
    %104 = vector.broadcast %54 : vector<1x16xf32> to vector<16x16xf32>
    %105 = arith.addf %103, %104 : vector<16x16xf32>
    %cst_41 = arith.constant 0.000000e+00 : f32
    %106 = vector.broadcast %cst_41 : f32 to vector<16x16xf32>
    %107 = arith.maximumf %105, %106 : vector<16x16xf32>
    %cst_42 = arith.constant dense<0.000000e+00> : vector<16x32xf32>
    %108 = tpu.matmul %107, %51, %cst_42 {dimension_numbers = #tpu.dot_dimension_numbers<[1], [0], [0], [1], [0, 0, 1, 1], [], []>} : vector<16x16xf32>, vector<16x32xf32>, vector<16x32xf32> -> vector<16x32xf32>
    %109 = vector.broadcast %52 : vector<1x32xf32> to vector<16x32xf32>
    %110 = arith.addf %108, %109 : vector<16x32xf32>
    %111 = arith.mulf %82, %82 : vector<16x32xf32>
    %cst_43 = arith.constant dense<0.000000e+00> : vector<16xf32>
    %112 = vector.multi_reduction <add>, %111, %cst_43 [1] : vector<16x32xf32> to vector<16xf32>
    %113 = vector.shape_cast %112 : vector<16xf32> to vector<16x1xf32>
    %114 = math.sqrt %113 : vector<16x1xf32>
    %cst_44 = arith.constant 9.99999993E-9 : f32
    %115 = vector.broadcast %cst_44 : f32 to vector<16x1xf32>
    %116 = arith.maximumf %114, %115 : vector<16x1xf32>
    %117 = arith.mulf %49, %49 : vector<16x32xf32>
    %cst_45 = arith.constant dense<0.000000e+00> : vector<16xf32>
    %118 = vector.multi_reduction <add>, %117, %cst_45 [1] : vector<16x32xf32> to vector<16xf32>
    %119 = vector.shape_cast %118 : vector<16xf32> to vector<16x1xf32>
    %120 = math.sqrt %119 : vector<16x1xf32>
    %cst_46 = arith.constant 9.99999993E-9 : f32
    %121 = vector.broadcast %cst_46 : f32 to vector<16x1xf32>
    %122 = arith.maximumf %120, %121 : vector<16x1xf32>
    %123 = arith.mulf %82, %49 : vector<16x32xf32>
    %cst_47 = arith.constant dense<0.000000e+00> : vector<16xf32>
    %124 = vector.multi_reduction <add>, %123, %cst_47 [1] : vector<16x32xf32> to vector<16xf32>
    %125 = vector.shape_cast %124 : vector<16xf32> to vector<16x1xf32>
    %126 = arith.mulf %116, %122 : vector<16x1xf32>
    %127 = arith.divf %125, %126 : vector<16x1xf32>
    %cst_48 = arith.constant dense<0.000000e+00> : vector<1xf32>
    %128 = vector.multi_reduction <add>, %127, %cst_48 [0] : vector<16x1xf32> to vector<1xf32>
    %129 = vector.shape_cast %128 : vector<1xf32> to vector<1x1xf32>
    %cst_49 = arith.constant 1.600000e+01 : f32
    %130 = vector.broadcast %cst_49 : f32 to vector<1x1xf32>
    %131 = arith.divf %129, %130 : vector<1x1xf32>
    %cst_50 = arith.constant 0.000000e+00 : f32
    %132 = vector.broadcast %cst_50 : f32 to vector<1x1xf32>
    %133 = arith.subf %132, %131 : vector<1x1xf32>
    %cst_51 = arith.constant 5.000000e-01 : f32
    %134 = vector.broadcast %cst_51 : f32 to vector<1x1xf32>
    %135 = arith.mulf %134, %133 : vector<1x1xf32>
    %136 = arith.mulf %110, %110 : vector<16x32xf32>
    %cst_52 = arith.constant dense<0.000000e+00> : vector<16xf32>
    %137 = vector.multi_reduction <add>, %136, %cst_52 [1] : vector<16x32xf32> to vector<16xf32>
    %138 = vector.shape_cast %137 : vector<16xf32> to vector<16x1xf32>
    %139 = math.sqrt %138 : vector<16x1xf32>
    %cst_53 = arith.constant 9.99999993E-9 : f32
    %140 = vector.broadcast %cst_53 : f32 to vector<16x1xf32>
    %141 = arith.maximumf %139, %140 : vector<16x1xf32>
    %142 = arith.mulf %25, %25 : vector<16x32xf32>
    %cst_54 = arith.constant dense<0.000000e+00> : vector<16xf32>
    %143 = vector.multi_reduction <add>, %142, %cst_54 [1] : vector<16x32xf32> to vector<16xf32>
    %144 = vector.shape_cast %143 : vector<16xf32> to vector<16x1xf32>
    %145 = math.sqrt %144 : vector<16x1xf32>
    %cst_55 = arith.constant 9.99999993E-9 : f32
    %146 = vector.broadcast %cst_55 : f32 to vector<16x1xf32>
    %147 = arith.maximumf %145, %146 : vector<16x1xf32>
    %148 = arith.mulf %110, %25 : vector<16x32xf32>
    %cst_56 = arith.constant dense<0.000000e+00> : vector<16xf32>
    %149 = vector.multi_reduction <add>, %148, %cst_56 [1] : vector<16x32xf32> to vector<16xf32>
    %150 = vector.shape_cast %149 : vector<16xf32> to vector<16x1xf32>
    %151 = arith.mulf %141, %147 : vector<16x1xf32>
    %152 = arith.divf %150, %151 : vector<16x1xf32>
    %cst_57 = arith.constant dense<0.000000e+00> : vector<1xf32>
    %153 = vector.multi_reduction <add>, %152, %cst_57 [0] : vector<16x1xf32> to vector<1xf32>
    %154 = vector.shape_cast %153 : vector<1xf32> to vector<1x1xf32>
    %cst_58 = arith.constant 1.600000e+01 : f32
    %155 = vector.broadcast %cst_58 : f32 to vector<1x1xf32>
    %156 = arith.divf %154, %155 : vector<1x1xf32>
    %cst_59 = arith.constant 0.000000e+00 : f32
    %157 = vector.broadcast %cst_59 : f32 to vector<1x1xf32>
    %158 = arith.subf %157, %156 : vector<1x1xf32>
    %cst_60 = arith.constant 5.000000e-01 : f32
    %159 = vector.broadcast %cst_60 : f32 to vector<1x1xf32>
    %160 = arith.mulf %159, %158 : vector<1x1xf32>
    %161 = arith.addf %135, %160 : vector<1x1xf32>
    %c0_61 = arith.constant 0 : index
    %c0_62 = arith.constant 0 : index
    %162 = vector.load %arg8[%c0_61, %c0_62] : memref<1x1xf32, #tpu.memory_space<vmem>>, vector<1x1xf32>
    tpu.vector_store %arg8[%c0_61, %c0_62], %161 {strides = array<i32>} : memref<1x1xf32, #tpu.memory_space<vmem>>, vector<1x1xf32>,
    return
  }
}

</mosaic_0001>

<llo_original>
// kernel: simsiam_forward.3
$region0: #{simsiam_forward.3}
  #allocation0 [shape = 'u32[]', space=smem, size = 0x4, offset = 0x4, fixed_abs, tag = 'smem constant byte address 0x4 - core index']
  #allocation1 [shape = 'u32[144,128]{1,0:T(1,128)}', space=vmem, size = 0x12000, scoped, tag = 'internal scratch']
  %s0 = inlined_call_operand.vmem [shape: f32[2,16,32], index: 0, kind: input, shape index: {}]
  %s1 = inlined_call_operand.vmem [shape: f32[1,32], index: 1, kind: input, shape index: {}]
  %s2 = inlined_call_operand.vmem [shape: f32[1,32], index: 2, kind: input, shape index: {}]
  %s3 = inlined_call_operand.vmem [shape: f32[32,16], index: 3, kind: input, shape index: {}]
  %s4 = inlined_call_operand.vmem [shape: f32[1,16], index: 4, kind: input, shape index: {}]
  %s5 = inlined_call_operand.vmem [shape: f32[1,16], index: 5, kind: input, shape index: {}]
  %s6 = inlined_call_operand.vmem [shape: f32[16,32], index: 6, kind: input, shape index: {}]
  %s7 = inlined_call_operand.vmem [shape: f32[1,32], index: 7, kind: input, shape index: {}]
  %s8 = inlined_call_operand.hbm [shape: f32[1,1], index: 8, kind: output, shape index: {}]
  %s9 = sld [smem:[#allocation0]]
  $region42: #{simsiam_forward.3} parent=0
    _
  %s11 = ssub.s32 1, %s9
  %s12 = scalar_select 0, %s11, %s9
  $region1: #{simsiam_forward.3} parent=0
    #allocation2 [shape = 'u8[512]{0}', space=vmem, size = 0x400, scoped, tag = 'output window, operand 0, single buffered']
    #allocation3 [shape = 's32[1]{0}', space=sflag, size = 0x4, scoped, tag = 'scoped memory for simsiam_forward.3']
    %13 = vsyncpa [#allocation3], 0
    // Predicated region
    $region2: #{simsiam_forward.3} parent=1 // pred_check
      _
    $region3: #{simsiam_forward.3} parent=1 // pred_check_branch
      %15 = sbr.rel (0) target = $region5
    $region4: #{simsiam_forward.3} parent=1 // pred_region
      _
    $region5: #{simsiam_forward.3} parent=1 // pred_fallthru
      _
    // Predicated region
    $region6: #{simsiam_forward.3} parent=1 // pred_check
      _
    $region7: #{simsiam_forward.3} parent=1 // pred_check_branch
      %17 = sbr.rel (0) target = $region9
    $region8: #{simsiam_forward.3} parent=1 // pred_region
      _
    $region9: #{simsiam_forward.3} parent=1 // pred_fallthru
      _
    // Predicated region
    $region10: #{simsiam_forward.3} parent=1 // pred_check
      _
    $region11: #{simsiam_forward.3} parent=1 // pred_check_branch
      %19 = sbr.rel (0) target = $region13
    $region12: #{simsiam_forward.3} parent=1 // pred_region
      _
    $region13: #{simsiam_forward.3} parent=1 // pred_fallthru
      _
    // Predicated region
    $region14: #{simsiam_forward.3} parent=1 // pred_check
      _
    $region15: #{simsiam_forward.3} parent=1 // pred_check_branch
      %21 = sbr.rel (0) target = $region17
    $region16: #{simsiam_forward.3} parent=1 // pred_region
      _
    $region17: #{simsiam_forward.3} parent=1 // pred_fallthru
      _
    // Predicated region
    $region18: #{simsiam_forward.3} parent=1 // pred_check
      _
    $region19: #{simsiam_forward.3} parent=1 // pred_check_branch
      %23 = sbr.rel (0) target = $region21
    $region20: #{simsiam_forward.3} parent=1 // pred_region
      _
    $region21: #{simsiam_forward.3} parent=1 // pred_fallthru
      _
    // Predicated region
    $region22: #{simsiam_forward.3} parent=1 // pred_check
      _
    $region23: #{simsiam_forward.3} parent=1 // pred_check_branch
      %25 = sbr.rel (0) target = $region25
    $region24: #{simsiam_forward.3} parent=1 // pred_region
      _
    $region25: #{simsiam_forward.3} parent=1 // pred_fallthru
      _
    // Predicated region
    $region26: #{simsiam_forward.3} parent=1 // pred_check
      _
    $region27: #{simsiam_forward.3} parent=1 // pred_check_branch
      %27 = sbr.rel (0) target = $region29
    $region28: #{simsiam_forward.3} parent=1 // pred_region
      _
    $region29: #{simsiam_forward.3} parent=1 // pred_fallthru
      _
    // Predicated region
    $region30: #{simsiam_forward.3} parent=1 // pred_check
      _
    $region31: #{simsiam_forward.3} parent=1 // pred_check_branch
      %29 = sbr.rel (0) target = $region33
    $region32: #{simsiam_forward.3} parent=1 // pred_region
      _
    $region33: #{simsiam_forward.3} parent=1 // pred_fallthru
      _
    %v30 = vld [vmem:[%s1] sm:$0x1]
    %v31 = vld [vmem:[%s2] sm:$0x1]
    %v32 = vld [vmem:[%s0] sm:$0xff]
    %v33 = vld [vmem:[%s0 + $0x8] sm:$0xff]
    %vm34 = vcmask 261120
    %v35 = vsel %vm34, %v32, 0.0
    %v36 = vsel %vm34, %v33, 0.0
    %v37 = vadd.f32 %v35, %v36
    %v38 = vrot.slane %v37, 4
    %v39 = vadd.f32 %v37, %v38
    %v40 = vrot.slane %v39, 2
    %v41 = vadd.f32 %v39, %v40
    %v42 = vrot.slane %v41, 1
    %v43 = vadd.f32 %v41, %v42
    %v44 = vrcp.pop 16.0
    %v45 = vmul.f32 %v43, %v44
    %v46 = vsub.f32 %v32, %v45
    %v47 = vsub.f32 %v33, %v45
    %v48 = vmul.f32 %v46, %v46
    %v49 = vmul.f32 %v47, %v47
    %v50 = vsel %vm34, %v48, 0.0
    %v51 = vsel %vm34, %v49, 0.0
    %v52 = vadd.f32 %v50, %v51
    %v53 = vrot.slane %v52, 4
    %v54 = vadd.f32 %v52, %v53
    %v55 = vrot.slane %v54, 2
    %v56 = vadd.f32 %v54, %v55
    %v57 = vrot.slane %v56, 1
    %v58 = vadd.f32 %v56, %v57
    %v59 = vmul.f32 %v58, %v44
    %v60 = vadd.f32 %v59, 1e-05
    %v61 = vrsqrt.pop %v60
    %v62 = vmul.f32 %v46, %v61
    %v63 = vmul.f32 %v47, %v61
    %v65 = vlaneseq
    %v66 = vshrl.u32 %v65, 7
    %v67 = vsub.s32 0, %v66
    %v68 = vrot.slane %v30, %v67
    %v70 = vmul.f32 %v62, %v68
    %v71 = vmul.f32 %v63, %v68
    %v73 = vlaneseq
    %v74 = vshrl.u32 %v73, 7
    %v75 = vsub.s32 0, %v74
    %v76 = vrot.slane %v31, %v75
    %v78 = vadd.f32 %v70, %v76
    %v79 = vadd.f32 %v71, %v76
    %s80 = scalar_lea.vmem %s0, 16
    %v81 = vld [vmem:[%s80] sm:$0xff]
    %v82 = vld [vmem:[%s80 + $0x8] sm:$0xff]
    %v83 = vsel %vm34, %v81, 0.0
    %v84 = vsel %vm34, %v82, 0.0
    %v85 = vadd.f32 %v83, %v84
    %v86 = vrot.slane %v85, 4
    %v87 = vadd.f32 %v85, %v86
    %v88 = vrot.slane %v87, 2
    %v89 = vadd.f32 %v87, %v88
    %v90 = vrot.slane %v89, 1
    %v91 = vadd.f32 %v89, %v90
    %v92 = vmul.f32 %v91, %v44
    %v93 = vsub.f32 %v81, %v92
    %v94 = vsub.f32 %v82, %v92
    %v95 = vmul.f32 %v93, %v93
    %v96 = vmul.f32 %v94, %v94
    %v97 = vsel %vm34, %v95, 0.0
    %v98 = vsel %vm34, %v96, 0.0
    %v99 = vadd.f32 %v97, %v98
    %v100 = vrot.slane %v99, 4
    %v101 = vadd.f32 %v99, %v100
    %v102 = vrot.slane %v101, 2
    %v103 = vadd.f32 %v101, %v102
    %v104 = vrot.slane %v103, 1
    %v105 = vadd.f32 %v103, %v104
    %v106 = vmul.f32 %v105, %v44
    %v107 = vadd.f32 %v106, 1e-05
    %v108 = vrsqrt.pop %v107
    %v109 = vmul.f32 %v93, %v108
    %v110 = vmul.f32 %v94, %v108
    %v111 = vmul.f32 %v109, %v68
    %v112 = vmul.f32 %v110, %v68
    %v113 = vadd.f32 %v111, %v76
    %v114 = vadd.f32 %v112, %v76
    %v115 = vld [vmem:[%s3] sm:$0xff]
    %v116 = vld [vmem:[%s3 + $0x8] sm:$0xff]
    %v117 = vld [vmem:[%s3 + $0x10] sm:$0xff]
    %v118 = vld [vmem:[%s3 + $0x18] sm:$0xff]
    %v119 = vld [vmem:[%s6] sm:$0xff]
    %v120 = vld [vmem:[%s6 + $0x8] sm:$0xff]
    %v121 = vld [vmem:[%s7] sm:$0x1]
    %v122 = vld [vmem:[%s4] sm:$0x1]
    %v123 = vld [vmem:[%s5] sm:$0x1]
    %v125 = vsel %vm34, %v78, 0
    %v128 = vsel %vm34, %v79, 0
    %130 = vmatprep.subr.mxu0 0.0
    %131 = vmatpush1.msra.mxu0 %v115
    %132 = vmatprep.subr.mxu0 0.0
    %133 = vmatpush1.msra.mxu0 %v116
    %134 = vmatprep.subr.mxu0 0.0
    %135 = vmatpush1.msra.mxu0 %v117
    %136 = vmatprep.subr.mxu0 0.0
    %137 = vmatpush1.msra.mxu0 %v118
    %138 = vmatprep.subr.mxu0 0.0
    %139 = vmatpush1.msra.mxu0 0.0
    %140 = vmatprep.subr.mxu0 0.0
    %141 = vmatpush1.msra.mxu0 0.0
    %142 = vmatprep.subr.mxu0 0.0
    %143 = vmatpush1.msra.mxu0 0.0
    %144 = vmatprep.subr.mxu0 0.0
    %145 = vmatpush1.msra.mxu0 0.0
    %146 = vmatprep.subr.mxu0 0.0
    %147 = vmatpush1.msra.mxu0 0.0
    %148 = vmatprep.subr.mxu0 0.0
    %149 = vmatpush1.msra.mxu0 0.0
    %150 = vmatprep.subr.mxu0 0.0
    %151 = vmatpush1.msra.mxu0 0.0
    %152 = vmatprep.subr.mxu0 0.0
    %153 = vmatpush1.msra.mxu0 0.0
    %154 = vmatprep.subr.mxu0 0.0
    %155 = vmatpush1.msra.mxu0 0.0
    %156 = vmatprep.subr.mxu0 0.0
    %157 = vmatpush1.msra.mxu0 0.0
    %158 = vmatprep.subr.mxu0 0.0
    %159 = vmatpush1.msra.mxu0 0.0
    %160 = vmatprep.subr.mxu0 0.0
    %161 = vmatpush1.msra.mxu0 0.0
    %162 = vmatprep.subr.mxu0 0.0
    %163 = vmatpush1.msra.mxu0 0.0
    %164 = vmatprep.subr.mxu0 0.0
    %165 = vmatpush1.msra.mxu0 0.0
    %166 = vmatprep.subr.mxu0 0.0
    %167 = vmatpush1.msra.mxu0 0.0
    %168 = vmatprep.subr.mxu0 0.0
    %169 = vmatpush1.msra.mxu0 0.0
    %170 = vmatprep.subr.mxu0 0.0
    %171 = vmatpush1.msra.mxu0 0.0
    %172 = vmatprep.subr.mxu0 0.0
    %173 = vmatpush1.msra.mxu0 0.0
    %174 = vmatprep.subr.mxu0 0.0
    %175 = vmatpush1.msra.mxu0 0.0
    %176 = vmatprep.subr.mxu0 0.0
    %177 = vmatpush1.msra.mxu0 0.0
    %178 = vmatprep.subr.mxu0 0.0
    %179 = vmatpush1.msra.mxu0 0.0
    %180 = vmatprep.subr.mxu0 0.0
    %181 = vmatpush1.msra.mxu0 0.0
    %182 = vmatprep.subr.mxu0 0.0
    %183 = vmatpush1.msra.mxu0 0.0
    %184 = vmatprep.subr.mxu0 0.0
    %185 = vmatpush1.msra.mxu0 0.0
    %186 = vmatprep.subr.mxu0 0.0
    %187 = vmatpush1.msra.mxu0 0.0
    %188 = vmatprep.subr.mxu0 0.0
    %189 = vmatpush1.msra.mxu0 0.0
    %190 = vmatprep.subr.mxu0 0.0
    %191 = vmatpush1.msra.mxu0 0.0
    %192 = vmatprep.subr.mxu0 0.0
    %193 = vmatpush1.msra.mxu0 0.0
    %194 = vmatprep.mubr.f32.mxu0 0.0
    %195 = vmatmul.mubr.f32.gmra.mrb[0].mxu0 %v125
    %v196 = vpop.f32.mrb[0].mxu0
    %v197 = vadd.f32 0.0, %v196
    %v198 = vpop.f32.mrb[0].mxu0
    %199 = vmatprep.mubr.f32.mxu0 0.0
    %200 = vmatmul.mubr.f32.gmra.mrb[0].mxu0 %v128
    %v201 = vpop.f32.mrb[0].mxu0
    %v202 = vadd.f32 0.0, %v201
    %v203 = vpop.f32.mrb[0].mxu0
    %204 = vdwg.mxu0
    %vm205 = vcmask 130048
    %v206 = vsel %vm205, %v197, 0.0
    %v207 = vsel %vm205, %v202, 0.0
    %v208 = vadd.f32 %v206, %v207
    %v209 = vrot.slane %v208, 4
    %v210 = vadd.f32 %v208, %v209
    %v211 = vrot.slane %v210, 2
    %v212 = vadd.f32 %v210, %v211
    %v213 = vrot.slane %v212, 1
    %v214 = vadd.f32 %v212, %v213
    %v215 = vmul.f32 %v214, %v44
    %v216 = vsub.f32 %v197, %v215
    %v217 = vsub.f32 %v202, %v215
    %v218 = vmul.f32 %v216, %v216
    %v219 = vmul.f32 %v217, %v217
    %v220 = vsel %vm205, %v218, 0.0
    %v221 = vsel %vm205, %v219, 0.0
    %v222 = vadd.f32 %v220, %v221
    %v223 = vrot.slane %v222, 4
    %v224 = vadd.f32 %v222, %v223
    %v225 = vrot.slane %v224, 2
    %v226 = vadd.f32 %v224, %v225
    %v227 = vrot.slane %v226, 1
    %v228 = vadd.f32 %v226, %v227
    %v229 = vmul.f32 %v228, %v44
    %v230 = vadd.f32 %v229, 1e-05
    %v231 = vrsqrt.pop %v230
    %v232 = vmul.f32 %v216, %v231
    %v233 = vmul.f32 %v217, %v231
    %v235 = vlaneseq
    %v236 = vshrl.u32 %v235, 7
    %v237 = vsub.s32 0, %v236
    %v238 = vrot.slane %v122, %v237
    %v240 = vmul.f32 %v232, %v238
    %v241 = vmul.f32 %v233, %v238
    %v243 = vlaneseq
    %v244 = vshrl.u32 %v243, 7
    %v245 = vsub.s32 0, %v244
    %v246 = vrot.slane %v123, %v245
    %v248 = vadd.f32 %v240, %v246
    %v249 = vadd.f32 %v241, %v246
    %v250 = vmax.f32 %v248, 0.0
    %v251 = vmax.f32 %v249, 0.0
    %v253 = vlaneseq
    %v254 = vshrl.u32 %v253, 7
    %v255 = vsub.s32 0, %v254
    %v256 = vrot.slane %v121, %v255
    %v259 = vsel %vm205, %v250, 0
    %v262 = vsel %vm205, %v251, 0
    %264 = vmatprep.subr.mxu0 0.0
    %265 = vmatpush1.msra.mxu0 %v119
    %266 = vmatprep.subr.mxu0 0.0
    %267 = vmatpush1.msra.mxu0 %v120
    %268 = vmatprep.subr.mxu0 0.0
    %269 = vmatpush1.msra.mxu0 0.0
    %270 = vmatprep.subr.mxu0 0.0
    %271 = vmatpush1.msra.mxu0 0.0
    %272 = vmatprep.subr.mxu0 0.0
    %273 = vmatpush1.msra.mxu0 0.0
    %274 = vmatprep.subr.mxu0 0.0
    %275 = vmatpush1.msra.mxu0 0.0
    %276 = vmatprep.subr.mxu0 0.0
    %277 = vmatpush1.msra.mxu0 0.0
    %278 = vmatprep.subr.mxu0 0.0
    %279 = vmatpush1.msra.mxu0 0.0
    %280 = vmatprep.subr.mxu0 0.0
    %281 = vmatpush1.msra.mxu0 0.0
    %282 = vmatprep.subr.mxu0 0.0
    %283 = vmatpush1.msra.mxu0 0.0
    %284 = vmatprep.subr.mxu0 0.0
    %285 = vmatpush1.msra.mxu0 0.0
    %286 = vmatprep.subr.mxu0 0.0
    %287 = vmatpush1.msra.mxu0 0.0
    %288 = vmatprep.subr.mxu0 0.0
    %289 = vmatpush1.msra.mxu0 0.0
    %290 = vmatprep.subr.mxu0 0.0
    %291 = vmatpush1.msra.mxu0 0.0
    %292 = vmatprep.subr.mxu0 0.0
    %293 = vmatpush1.msra.mxu0 0.0
    %294 = vmatprep.subr.mxu0 0.0
    %295 = vmatpush1.msra.mxu0 0.0
    %296 = vmatprep.subr.mxu0 0.0
    %297 = vmatpush1.msra.mxu0 0.0
    %298 = vmatprep.subr.mxu0 0.0
    %299 = vmatpush1.msra.mxu0 0.0
    %300 = vmatprep.subr.mxu0 0.0
    %301 = vmatpush1.msra.mxu0 0.0
    %302 = vmatprep.subr.mxu0 0.0
    %303 = vmatpush1.msra.mxu0 0.0
    %304 = vmatprep.subr.mxu0 0.0
    %305 = vmatpush1.msra.mxu0 0.0
    %306 = vmatprep.subr.mxu0 0.0
    %307 = vmatpush1.msra.mxu0 0.0
    %308 = vmatprep.subr.mxu0 0.0
    %309 = vmatpush1.msra.mxu0 0.0
    %310 = vmatprep.subr.mxu0 0.0
    %311 = vmatpush1.msra.mxu0 0.0
    %312 = vmatprep.subr.mxu0 0.0
    %313 = vmatpush1.msra.mxu0 0.0
    %314 = vmatprep.subr.mxu0 0.0
    %315 = vmatpush1.msra.mxu0 0.0
    %316 = vmatprep.subr.mxu0 0.0
    %317 = vmatpush1.msra.mxu0 0.0
    %318 = vmatprep.subr.mxu0 0.0
    %319 = vmatpush1.msra.mxu0 0.0
    %320 = vmatprep.subr.mxu0 0.0
    %321 = vmatpush1.msra.mxu0 0.0
    %322 = vmatprep.subr.mxu0 0.0
    %323 = vmatpush1.msra.mxu0 0.0
    %324 = vmatprep.subr.mxu0 0.0
    %325 = vmatpush1.msra.mxu0 0.0
    %326 = vmatprep.subr.mxu0 0.0
    %327 = vmatpush1.msra.mxu0 0.0
    %328 = vmatprep.mubr.f32.mxu0 0.0
    %329 = vmatmul.mubr.f32.gmra.mrb[0].mxu0 %v259
    %v330 = vpop.f32.mrb[0].mxu0
    %v331 = vadd.f32 %v256, %v330
    %v332 = vpop.f32.mrb[0].mxu0
    %333 = vmatprep.mubr.f32.mxu0 0.0
    %334 = vmatmul.mubr.f32.gmra.mrb[0].mxu0 %v262
    %v335 = vpop.f32.mrb[0].mxu0
    %v336 = vadd.f32 %v256, %v335
    %v337 = vpop.f32.mrb[0].mxu0
    %338 = vdwg.mxu0
    %v340 = vsel %vm34, %v113, 0
    %v343 = vsel %vm34, %v114, 0
    %345 = vmatprep.subr.mxu0 0.0
    %346 = vmatpush1.msra.mxu0 %v115
    %347 = vmatprep.subr.mxu0 0.0
    %348 = vmatpush1.msra.mxu0 %v116
    %349 = vmatprep.subr.mxu0 0.0
    %350 = vmatpush1.msra.mxu0 %v117
    %351 = vmatprep.subr.mxu0 0.0
    %352 = vmatpush1.msra.mxu0 %v118
    %353 = vmatprep.subr.mxu0 0.0
    %354 = vmatpush1.msra.mxu0 0.0
    %355 = vmatprep.subr.mxu0 0.0
    %356 = vmatpush1.msra.mxu0 0.0
    %357 = vmatprep.subr.mxu0 0.0
    %358 = vmatpush1.msra.mxu0 0.0
    %359 = vmatprep.subr.mxu0 0.0
    %360 = vmatpush1.msra.mxu0 0.0
    %361 = vmatprep.subr.mxu0 0.0
    %362 = vmatpush1.msra.mxu0 0.0
    %363 = vmatprep.subr.mxu0 0.0
    %364 = vmatpush1.msra.mxu0 0.0
    %365 = vmatprep.subr.mxu0 0.0
    %366 = vmatpush1.msra.mxu0 0.0
    %367 = vmatprep.subr.mxu0 0.0
    %368 = vmatpush1.msra.mxu0 0.0
    %369 = vmatprep.subr.mxu0 0.0
    %370 = vmatpush1.msra.mxu0 0.0
    %371 = vmatprep.subr.mxu0 0.0
    %372 = vmatpush1.msra.mxu0 0.0
    %373 = vmatprep.subr.mxu0 0.0
    %374 = vmatpush1.msra.mxu0 0.0
    %375 = vmatprep.subr.mxu0 0.0
    %376 = vmatpush1.msra.mxu0 0.0
    %377 = vmatprep.subr.mxu0 0.0
    %378 = vmatpush1.msra.mxu0 0.0
    %379 = vmatprep.subr.mxu0 0.0
    %380 = vmatpush1.msra.mxu0 0.0
    %381 = vmatprep.subr.mxu0 0.0
    %382 = vmatpush1.msra.mxu0 0.0
    %383 = vmatprep.subr.mxu0 0.0
    %384 = vmatpush1.msra.mxu0 0.0
    %385 = vmatprep.subr.mxu0 0.0
    %386 = vmatpush1.msra.mxu0 0.0
    %387 = vmatprep.subr.mxu0 0.0
    %388 = vmatpush1.msra.mxu0 0.0
    %389 = vmatprep.subr.mxu0 0.0
    %390 = vmatpush1.msra.mxu0 0.0
    %391 = vmatprep.subr.mxu0 0.0
    %392 = vmatpush1.msra.mxu0 0.0
    %393 = vmatprep.subr.mxu0 0.0
    %394 = vmatpush1.msra.mxu0 0.0
    %395 = vmatprep.subr.mxu0 0.0
    %396 = vmatpush1.msra.mxu0 0.0
    %397 = vmatprep.subr.mxu0 0.0
    %398 = vmatpush1.msra.mxu0 0.0
    %399 = vmatprep.subr.mxu0 0.0
    %400 = vmatpush1.msra.mxu0 0.0
    %401 = vmatprep.subr.mxu0 0.0
    %402 = vmatpush1.msra.mxu0 0.0
    %403 = vmatprep.subr.mxu0 0.0
    %404 = vmatpush1.msra.mxu0 0.0
    %405 = vmatprep.subr.mxu0 0.0
    %406 = vmatpush1.msra.mxu0 0.0
    %407 = vmatprep.subr.mxu0 0.0
    %408 = vmatpush1.msra.mxu0 0.0
    %409 = vmatprep.mubr.f32.mxu0 0.0
    %410 = vmatmul.mubr.f32.gmra.mrb[0].mxu0 %v340
    %v411 = vpop.f32.mrb[0].mxu0
    %v412 = vadd.f32 0.0, %v411
    %v413 = vpop.f32.mrb[0].mxu0
    %414 = vmatprep.mubr.f32.mxu0 0.0
    %415 = vmatmul.mubr.f32.gmra.mrb[0].mxu0 %v343
    %v416 = vpop.f32.mrb[0].mxu0
    %v417 = vadd.f32 0.0, %v416
    %v418 = vpop.f32.mrb[0].mxu0
    %419 = vdwg.mxu0
    %v420 = vsel %vm205, %v412, 0.0
    %v421 = vsel %vm205, %v417, 0.0
    %v422 = vadd.f32 %v420, %v421
    %v423 = vrot.slane %v422, 4
    %v424 = vadd.f32 %v422, %v423
    %v425 = vrot.slane %v424, 2
    %v426 = vadd.f32 %v424, %v425
    %v427 = vrot.slane %v426, 1
    %v428 = vadd.f32 %v426, %v427
    %v429 = vmul.f32 %v428, %v44
    %v430 = vsub.f32 %v412, %v429
    %v431 = vsub.f32 %v417, %v429
    %v432 = vmul.f32 %v430, %v430
    %v433 = vmul.f32 %v431, %v431
    %v434 = vsel %vm205, %v432, 0.0
    %v435 = vsel %vm205, %v433, 0.0
    %v436 = vadd.f32 %v434, %v435
    %v437 = vrot.slane %v436, 4
    %v438 = vadd.f32 %v436, %v437
    %v439 = vrot.slane %v438, 2
    %v440 = vadd.f32 %v438, %v439
    %v441 = vrot.slane %v440, 1
    %v442 = vadd.f32 %v440, %v441
    %v443 = vmul.f32 %v442, %v44
    %v444 = vadd.f32 %v443, 1e-05
    %v445 = vrsqrt.pop %v444
    %v446 = vmul.f32 %v430, %v445
    %v447 = vmul.f32 %v431, %v445
    %v448 = vmul.f32 %v446, %v238
    %v449 = vmul.f32 %v447, %v238
    %v450 = vadd.f32 %v448, %v246
    %v451 = vadd.f32 %v449, %v246
    %v452 = vmax.f32 %v450, 0.0
    %v453 = vmax.f32 %v451, 0.0
    %v455 = vsel %vm205, %v452, 0
    %v458 = vsel %vm205, %v453, 0
    %460 = vmatprep.subr.mxu0 0.0
    %461 = vmatpush1.msra.mxu0 %v119
    %462 = vmatprep.subr.mxu0 0.0
    %463 = vmatpush1.msra.mxu0 %v120
    %464 = vmatprep.subr.mxu0 0.0
    %465 = vmatpush1.msra.mxu0 0.0
    %466 = vmatprep.subr.mxu0 0.0
    %467 = vmatpush1.msra.mxu0 0.0
    %468 = vmatprep.subr.mxu0 0.0
    %469 = vmatpush1.msra.mxu0 0.0
    %470 = vmatprep.subr.mxu0 0.0
    %471 = vmatpush1.msra.mxu0 0.0
    %472 = vmatprep.subr.mxu0 0.0
    %473 = vmatpush1.msra.mxu0 0.0
    %474 = vmatprep.subr.mxu0 0.0
    %475 = vmatpush1.msra.mxu0 0.0
    %476 = vmatprep.subr.mxu0 0.0
    %477 = vmatpush1.msra.mxu0 0.0
    %478 = vmatprep.subr.mxu0 0.0
    %479 = vmatpush1.msra.mxu0 0.0
    %480 = vmatprep.subr.mxu0 0.0
    %481 = vmatpush1.msra.mxu0 0.0
    %482 = vmatprep.subr.mxu0 0.0
    %483 = vmatpush1.msra.mxu0 0.0
    %484 = vmatprep.subr.mxu0 0.0
    %485 = vmatpush1.msra.mxu0 0.0
    %486 = vmatprep.subr.mxu0 0.0
    %487 = vmatpush1.msra.mxu0 0.0
    %488 = vmatprep.subr.mxu0 0.0
    %489 = vmatpush1.msra.mxu0 0.0
    %490 = vmatprep.subr.mxu0 0.0
    %491 = vmatpush1.msra.mxu0 0.0
    %492 = vmatprep.subr.mxu0 0.0
    %493 = vmatpush1.msra.mxu0 0.0
    %494 = vmatprep.subr.mxu0 0.0
    %495 = vmatpush1.msra.mxu0 0.0
    %496 = vmatprep.subr.mxu0 0.0
    %497 = vmatpush1.msra.mxu0 0.0
    %498 = vmatprep.subr.mxu0 0.0
    %499 = vmatpush1.msra.mxu0 0.0
    %500 = vmatprep.subr.mxu0 0.0
    %501 = vmatpush1.msra.mxu0 0.0
    %502 = vmatprep.subr.mxu0 0.0
    %503 = vmatpush1.msra.mxu0 0.0
    %504 = vmatprep.subr.mxu0 0.0
    %505 = vmatpush1.msra.mxu0 0.0
    %506 = vmatprep.subr.mxu0 0.0
    %507 = vmatpush1.msra.mxu0 0.0
    %508 = vmatprep.subr.mxu0 0.0
    %509 = vmatpush1.msra.mxu0 0.0
    %510 = vmatprep.subr.mxu0 0.0
    %511 = vmatpush1.msra.mxu0 0.0
    %512 = vmatprep.subr.mxu0 0.0
    %513 = vmatpush1.msra.mxu0 0.0
    %514 = vmatprep.subr.mxu0 0.0
    %515 = vmatpush1.msra.mxu0 0.0
    %516 = vmatprep.subr.mxu0 0.0
    %517 = vmatpush1.msra.mxu0 0.0
    %518 = vmatprep.subr.mxu0 0.0
    %519 = vmatpush1.msra.mxu0 0.0
    %520 = vmatprep.subr.mxu0 0.0
    %521 = vmatpush1.msra.mxu0 0.0
    %522 = vmatprep.subr.mxu0 0.0
    %523 = vmatpush1.msra.mxu0 0.0
    %524 = vmatprep.mubr.f32.mxu0 0.0
    %525 = vmatmul.mubr.f32.gmra.mrb[0].mxu0 %v455
    %v526 = vpop.f32.mrb[0].mxu0
    %v527 = vadd.f32 %v256, %v526
    %v528 = vpop.f32.mrb[0].mxu0
    %529 = vmatprep.mubr.f32.mxu0 0.0
    %530 = vmatmul.mubr.f32.gmra.mrb[0].mxu0 %v458
    %v531 = vpop.f32.mrb[0].mxu0
    %v532 = vadd.f32 %v256, %v531
    %v533 = vpop.f32.mrb[0].mxu0
    %534 = vdwg.mxu0
    %v535 = vmul.f32 %v331, %v331
    %v536 = vmul.f32 %v336, %v336
    %v537 = vsel %vm34, %v535, 0.0
    %538 = vadd.xlane.f32.xlu0 %v537
    %v539 = vpop.xlane.xlu0 %538
    %v540 = vsel %vm34, %v536, 0.0
    %541 = vadd.xlane.f32.xlu0 %v540
    %v542 = vpop.xlane.xlu0 %541
    %v543 = vrsqrt.pop %v539
    %v544 = vmul.f32 %v539, %v543
    %vm545 = vcmp.eq.f32.partialorder %v539, inf
    %v546 = vsel %vm545, %v539, %v544
    %vm547 = vcmp.eq.f32.partialorder %v539, 0.0
    %v548 = vand.u32 %v539, 2147483648
    %v549 = vsel %vm547, %v548, %v546
    %v550 = vrsqrt.pop %v542
    %v551 = vmul.f32 %v542, %v550
    %vm552 = vcmp.eq.f32.partialorder %v542, inf
    %v553 = vsel %vm552, %v542, %v551
    %vm554 = vcmp.eq.f32.partialorder %v542, 0.0
    %v555 = vand.u32 %v542, 2147483648
    %v556 = vsel %vm554, %v555, %v553
    %v557 = vmax.f32 %v549, 1e-08
    %v558 = vmax.f32 %v556, 1e-08
    %v559 = vmul.f32 %v113, %v113
    %v560 = vmul.f32 %v114, %v114
    %v561 = vsel %vm34, %v559, 0.0
    %562 = vadd.xlane.f32.xlu0 %v561
    %v563 = vpop.xlane.xlu0 %562
    %v564 = vsel %vm34, %v560, 0.0
    %565 = vadd.xlane.f32.xlu0 %v564
    %v566 = vpop.xlane.xlu0 %565
    %v567 = vrsqrt.pop %v563
    %v568 = vmul.f32 %v563, %v567
    %vm569 = vcmp.eq.f32.partialorder %v563, inf
    %v570 = vsel %vm569, %v563, %v568
    %vm571 = vcmp.eq.f32.partialorder %v563, 0.0
    %v572 = vand.u32 %v563, 2147483648
    %v573 = vsel %vm571, %v572, %v570
    %v574 = vrsqrt.pop %v566
    %v575 = vmul.f32 %v566, %v574
    %vm576 = vcmp.eq.f32.partialorder %v566, inf
    %v577 = vsel %vm576, %v566, %v575
    %vm578 = vcmp.eq.f32.partialorder %v566, 0.0
    %v579 = vand.u32 %v566, 2147483648
    %v580 = vsel %vm578, %v579, %v577
    %v581 = vmax.f32 %v573, 1e-08
    %v582 = vmax.f32 %v580, 1e-08
    %v583 = vmul.f32 %v331, %v113
    %v584 = vmul.f32 %v336, %v114
    %v585 = vsel %vm34, %v583, 0.0
    %586 = vadd.xlane.f32.xlu0 %v585
    %v587 = vpop.xlane.xlu0 %586
    %v588 = vsel %vm34, %v584, 0.0
    %589 = vadd.xlane.f32.xlu0 %v588
    %v590 = vpop.xlane.xlu0 %589
    %v591 = vmul.f32 %v557, %v581
    %v592 = vmul.f32 %v558, %v582
    %v593 = vrcp.pop %v591
    %v594 = vmul.f32 %v587, %v593
    %v595 = vrcp.pop %v592
    %v596 = vmul.f32 %v590, %v595
    %v597 = vadd.f32 %v594, %v596
    %v598 = vrot.slane %v597, 4
    %v599 = vadd.f32 %v597, %v598
    %v600 = vrot.slane %v599, 2
    %v601 = vadd.f32 %v599, %v600
    %v602 = vrot.slane %v601, 1
    %v603 = vadd.f32 %v601, %v602
    %v604 = vmul.f32 %v603, %v44
    %v605 = vsub.f32 0.0, %v604
    %v606 = vmul.f32 %v605, 0.5
    %v607 = vmul.f32 %v527, %v527
    %v608 = vmul.f32 %v532, %v532
    %v609 = vsel %vm34, %v607, 0.0
    %610 = vadd.xlane.f32.xlu0 %v609
    %v611 = vpop.xlane.xlu0 %610
    %v612 = vsel %vm34, %v608, 0.0
    %613 = vadd.xlane.f32.xlu0 %v612
    %v614 = vpop.xlane.xlu0 %613
    %v615 = vrsqrt.pop %v611
    %v616 = vmul.f32 %v611, %v615
    %vm617 = vcmp.eq.f32.partialorder %v611, inf
    %v618 = vsel %vm617, %v611, %v616
    %vm619 = vcmp.eq.f32.partialorder %v611, 0.0
    %v620 = vand.u32 %v611, 2147483648
    %v621 = vsel %vm619, %v620, %v618
    %v622 = vrsqrt.pop %v614
    %v623 = vmul.f32 %v614, %v622
    %vm624 = vcmp.eq.f32.partialorder %v614, inf
    %v625 = vsel %vm624, %v614, %v623
    %vm626 = vcmp.eq.f32.partialorder %v614, 0.0
    %v627 = vand.u32 %v614, 2147483648
    %v628 = vsel %vm626, %v627, %v625
    %v629 = vmax.f32 %v621, 1e-08
    %v630 = vmax.f32 %v628, 1e-08
    %v631 = vmul.f32 %v78, %v78
    %v632 = vmul.f32 %v79, %v79
    %v633 = vsel %vm34, %v631, 0.0
    %634 = vadd.xlane.f32.xlu0 %v633
    %v635 = vpop.xlane.xlu0 %634
    %v636 = vsel %vm34, %v632, 0.0
    %637 = vadd.xlane.f32.xlu0 %v636
    %v638 = vpop.xlane.xlu0 %637
    %v639 = vrsqrt.pop %v635
    %v640 = vmul.f32 %v635, %v639
    %vm641 = vcmp.eq.f32.partialorder %v635, inf
    %v642 = vsel %vm641, %v635, %v640
    %vm643 = vcmp.eq.f32.partialorder %v635, 0.0
    %v644 = vand.u32 %v635, 2147483648
    %v645 = vsel %vm643, %v644, %v642
    %v646 = vrsqrt.pop %v638
    %v647 = vmul.f32 %v638, %v646
    %vm648 = vcmp.eq.f32.partialorder %v638, inf
    %v649 = vsel %vm648, %v638, %v647
    %vm650 = vcmp.eq.f32.partialorder %v638, 0.0
    %v651 = vand.u32 %v638, 2147483648
    %v652 = vsel %vm650, %v651, %v649
    %v653 = vmax.f32 %v645, 1e-08
    %v654 = vmax.f32 %v652, 1e-08
    %v655 = vmul.f32 %v527, %v78
    %v656 = vmul.f32 %v532, %v79
    %v657 = vsel %vm34, %v655, 0.0
    %658 = vadd.xlane.f32.xlu0 %v657
    %v659 = vpop.xlane.xlu0 %658
    %v660 = vsel %vm34, %v656, 0.0
    %661 = vadd.xlane.f32.xlu0 %v660
    %v662 = vpop.xlane.xlu0 %661
    %v663 = vmul.f32 %v629, %v653
    %v664 = vmul.f32 %v630, %v654
    %v665 = vrcp.pop %v663
    %v666 = vmul.f32 %v659, %v665
    %v667 = vrcp.pop %v664
    %v668 = vmul.f32 %v662, %v667
    %v669 = vadd.f32 %v666, %v668
    %v670 = vrot.slane %v669, 4
    %v671 = vadd.f32 %v669, %v670
    %v672 = vrot.slane %v671, 2
    %v673 = vadd.f32 %v671, %v672
    %v674 = vrot.slane %v673, 1
    %v675 = vadd.f32 %v673, %v674
    %v676 = vmul.f32 %v675, %v44
    %v677 = vsub.f32 0.0, %v676
    %v678 = vmul.f32 %v677, 0.5
    %v679 = vadd.f32 %v606, %v678
    %vm680 = vcmask 0
    %681 = vst.msk [vmem:[#allocation2] sm:$0x1] %vm680, %v679
    // Predicated region
    $region34: #{simsiam_forward.3} parent=1 // pred_check
      _
    $region35: #{simsiam_forward.3} parent=1 // pred_check_branch
      %683 = sbr.rel (0) target = $region37
    $region36: #{simsiam_forward.3} parent=1 // pred_region
      %s685 = ssub.s32 16, 16
      %686 = vsyncadd [#allocation3], %s685
      %s688 = sshll.u32 [#allocation2], 4
      %s689 = int_to_ptr.vmem [resolvable:$true] %s688
      %691 = dma.vmem_to_hbm [thread:$0]  %s689, 16, %s8, [#allocation3]
    $region37: #{simsiam_forward.3} parent=1 // pred_fallthru
      _
    // Predicated region
    $region38: #{simsiam_forward.3} parent=1 // pred_check
      _
    $region39: #{simsiam_forward.3} parent=1 // pred_check_branch
      %693 = sbr.rel (0) target = $region41
    $region40: #{simsiam_forward.3} parent=1 // pred_region
      %694 = dma.done [#allocation3], 16
    $region41: #{simsiam_forward.3} parent=1 // pred_fallthru
      _
    %695 = vsyncpa [#allocation3], 1

// kernel: simsiam_forward.2
$region0: #{simsiam_forward.2}
  #allocation0 [shape = 'u32[]', space=smem, size = 0x4, offset = 0x4, fixed_abs, tag = 'smem constant byte address 0x4 - core index']
  #allocation1 [shape = 'u32[144,128]{1,0:T(1,128)}', space=vmem, size = 0x12000, scoped, tag = 'internal scratch']
  %s0 = inlined_call_operand.vmem [shape: bf16[2,16,8,16], index: 0, kind: input, shape index: {}]
  %s1 = inlined_call_operand.vmem [shape: bf16[2,16,8,8], index: 1, kind: input, shape index: {}]
  %s2 = inlined_call_operand.vmem [shape: bf16[16,32], index: 2, kind: input, shape index: {}]
  %s3 = inlined_call_operand.vmem [shape: f32[2,16,32], index: 3, kind: output, shape index: {}]
  %s4 = sld [smem:[#allocation0]]
  $region45: #{simsiam_forward.2} parent=0
    _
  %s6 = ssub.s32 1, %s4
  %s7 = scalar_select 0, %s6, %s4
  loop: start=0, step=1, limit=4
  $region2: #{simsiam_forward.2} parent=0 // loop_pre_header
    _
  $region3: #{simsiam_forward.2} parent=0 // loop_header
    %s9 = sphi 0, %s13
    %p10 = scmp.ge.s32.totalorder %s9, 4
    %s16 = sphi 0, %s28
    %s17 = sphi 0, %s24
    %s18 = sphi 0, %s16
    %s19 = sphi 0, %s17
    %s20 = sphi 0, %s18
    %s21 = sphi 0, %s19
    %s33 = sphi 0, %s35
    %s36 = sphi 0, %s33
    %s37 = sphi 0, %s36
    %s53 = sphi 0, %s37
    %s61 = sphi 0, %s63
    %s64 = sphi 0, %s61
    %s65 = sphi 0, %s64
    %s81 = sphi 0, %s65
    %s85 = sphi 0, %s85
    %s87 = sphi 0, %s85
    %s88 = sphi 0, %s87
    %s102 = sphi 0, %s88
    %s110 = sphi 0, %s112
    %s113 = sphi 0, %s110
    %s114 = sphi 0, %s113
    %s130 = sphi 0, %s114
  $region4: #{simsiam_forward.2} parent=0 // loop_header_branch
    %12 = sbr.rel (%p10) target = $region8
  $region5: #{simsiam_forward.2} parent=0 // loop_body
    %s14 = ssub.s32 %s9, 1
    %s15 = ssub.s32 %s9, 2
    %s22 = sadd.s32 1, %s17
    %p23 = scmp.ge.s32.totalorder %s22, 1
    %s24 = scalar_select %p23, 0, %s22
    %s25 = sadd.s32 1, %s16
    %s26 = scalar_select %p23, %s25, %s16
    %p27 = scmp.ge.s32.totalorder %s26, 2
    %s28 = scalar_select %p27, 0, %s26
    %s29 = ssub.s32 %s16, %s28
    %s30 = ssub.s32 %s17, %s24
    %s31 = sor.u32 %s29, %s30
    %p32 = scmp.eq.s32.totalorder %s31, 0
    %s34 = sadd.s32 %s33, 1
    %s35 = scalar_select %p32, %s33, %s34
    %p38 = pneg %p32
    %p39 = scmp.eq.s32.totalorder %s9, 1
    %p40 = por %p38, %p39
    %p41 = scmp.ne.s32.totalorder %s33, %s36
    %p42 = scmp.eq.s32.totalorder %s9, 0
    %p43 = por %p41, %p42
    %p44 = scmp.ne.s32.totalorder %s33, %s36
    %p45 = scmp.eq.s32.totalorder %s14, 1
    %p46 = por %p44, %p45
    %p47 = scmp.ne.s32.totalorder %s36, %s37
    %p48 = scmp.eq.s32.totalorder %s14, 0
    %p49 = por %p47, %p48
    %p50 = scmp.ne.s32.totalorder %s36, %s37
    %p51 = scmp.eq.s32.totalorder %s15, 1
    %p52 = por %p50, %p51
    %p54 = scmp.ne.s32.totalorder %s37, %s53
    %p55 = scmp.eq.s32.totalorder %s15, 0
    %p56 = por %p54, %p55
    %s57 = ssub.s32 %s16, %s28
    %s58 = ssub.s32 %s17, %s24
    %s59 = sor.u32 %s57, %s58
    %p60 = scmp.eq.s32.totalorder %s59, 0
    %s62 = sadd.s32 %s61, 1
    %s63 = scalar_select %p60, %s61, %s62
    %p66 = pneg %p60
    %p67 = scmp.eq.s32.totalorder %s9, 1
    %p68 = por %p66, %p67
    %p69 = scmp.ne.s32.totalorder %s61, %s64
    %p70 = scmp.eq.s32.totalorder %s9, 0
    %p71 = por %p69, %p70
    %p72 = scmp.ne.s32.totalorder %s61, %s64
    %p73 = scmp.eq.s32.totalorder %s14, 1
    %p74 = por %p72, %p73
    %p75 = scmp.ne.s32.totalorder %s64, %s65
    %p76 = scmp.eq.s32.totalorder %s14, 0
    %p77 = por %p75, %p76
    %p78 = scmp.ne.s32.totalorder %s64, %s65
    %p79 = scmp.eq.s32.totalorder %s15, 1
    %p80 = por %p78, %p79
    %p82 = scmp.ne.s32.totalorder %s65, %s81
    %p83 = scmp.eq.s32.totalorder %s15, 0
    %p84 = por %p82, %p83
    %s86 = sadd.s32 %s85, 1
    %p89 = scmp.eq.s32.totalorder %s9, 1
    %p90 = scmp.ne.s32.totalorder %s85, %s87
    %p91 = scmp.eq.s32.totalorder %s9, 0
    %p92 = por %p90, %p91
    %p93 = scmp.ne.s32.totalorder %s85, %s87
    %p94 = scmp.eq.s32.totalorder %s14, 1
    %p95 = por %p93, %p94
    %p96 = scmp.ne.s32.totalorder %s87, %s88
    %p97 = scmp.eq.s32.totalorder %s14, 0
    %p98 = por %p96, %p97
    %p99 = scmp.ne.s32.totalorder %s87, %s88
    %p100 = scmp.eq.s32.totalorder %s15, 1
    %p101 = por %p99, %p100
    %p103 = scmp.ne.s32.totalorder %s88, %s102
    %p104 = scmp.eq.s32.totalorder %s15, 0
    %p105 = por %p103, %p104
    %s106 = ssub.s32 %s16, %s28
    %s107 = ssub.s32 %s17, %s24
    %s108 = sor.u32 %s106, %s107
    %p109 = scmp.eq.s32.totalorder %s108, 0
    %s111 = sadd.s32 %s110, 1
    %s112 = scalar_select %p109, %s110, %s111
    %p115 = pneg %p109
    %p116 = scmp.eq.s32.totalorder %s9, 1
    %p117 = por %p115, %p116
    %p118 = scmp.ne.s32.totalorder %s110, %s113
    %p119 = scmp.eq.s32.totalorder %s9, 0
    %p120 = por %p118, %p119
    %p121 = scmp.ne.s32.totalorder %s110, %s113
    %p122 = scmp.eq.s32.totalorder %s14, 1
    %p123 = por %p121, %p122
    %p124 = scmp.ne.s32.totalorder %s113, %s114
    %p125 = scmp.eq.s32.totalorder %s14, 0
    %p126 = por %p124, %p125
    %p127 = scmp.ne.s32.totalorder %s113, %s114
    %p128 = scmp.eq.s32.totalorder %s15, 1
    %p129 = por %p127, %p128
    %p131 = scmp.ne.s32.totalorder %s114, %s130
    %p132 = scmp.eq.s32.totalorder %s15, 0
    %p133 = por %p131, %p132
    %p134 = scmp.le.s32.totalorder 1, %s9
    %p135 = scmp.lt.s32.totalorder %s9, 3
    %p136 = pnand %p134, %p135
    %p137 = pneg %p136
    // Predicated region
    $region9: #{simsiam_forward.2} parent=5 // pred_check
      _
    $region10: #{simsiam_forward.2} parent=5 // pred_check_branch
      %139 = sbr.rel (%p136) target = $region12
    $region11: #{simsiam_forward.2} parent=5 // pred_region
      %s140 = ssub.s32 %s9, 1
      // Predicated region
      $region13: #{simsiam_forward.2} parent=11 // pred_check
        %p141 = pneg %p98
      $region14: #{simsiam_forward.2} parent=11 // pred_check_branch
        %143 = sbr.rel (%p141) target = $region16
      $region15: #{simsiam_forward.2} parent=11 // pred_region
        _
      $region16: #{simsiam_forward.2} parent=11 // pred_fallthru
        _
    $region12: #{simsiam_forward.2} parent=5 // pred_fallthru
      _
    %p144 = scmp.lt.s32.totalorder %s9, 2
    // Predicated region
    $region17: #{simsiam_forward.2} parent=5 // pred_check
      %p145 = pneg %p144
    $region18: #{simsiam_forward.2} parent=5 // pred_check_branch
      %147 = sbr.rel (%p145) target = $region20
    $region19: #{simsiam_forward.2} parent=5 // pred_region
      // Predicated region
      $region21: #{simsiam_forward.2} parent=19 // pred_check
        %p148 = pneg %p43
      $region22: #{simsiam_forward.2} parent=19 // pred_check_branch
        %150 = sbr.rel (%p148) target = $region24
      $region23: #{simsiam_forward.2} parent=19 // pred_region
        %s151 = smul.u32 16, %s17
        %p152 = scmp.lt.s32.totalorder %s16, 1
        %s153 = scalar_select %p152, %s16, 1
        %p154 = scmp.lt.s32.totalorder %s151, 15
        %s155 = scalar_select %p154, %s151, 15
        %s156 = smul.addr %s153, 16
        %s157 = sadd.s32 %s155, %s156
        %s158 = smul.addr %s157, 4
        %s159 = scalar_lea.vmem %s0, %s158
        %s160 = smul.u32 16, %s17
      $region24: #{simsiam_forward.2} parent=19 // pred_fallthru
        _
      // Predicated region
      $region25: #{simsiam_forward.2} parent=19 // pred_check
        %p161 = pneg %p71
      $region26: #{simsiam_forward.2} parent=19 // pred_check_branch
        %163 = sbr.rel (%p161) target = $region28
      $region27: #{simsiam_forward.2} parent=19 // pred_region
        %s164 = smul.u32 16, %s17
        %p165 = scmp.lt.s32.totalorder %s16, 1
        %s166 = scalar_select %p165, %s16, 1
        %p167 = scmp.lt.s32.totalorder %s164, 15
        %s168 = scalar_select %p167, %s164, 15
        %s169 = smul.addr %s166, 16
        %s170 = sadd.s32 %s168, %s169
        %s171 = smul.addr %s170, 4
        %s172 = scalar_lea.vmem %s1, %s171
        %s173 = smul.u32 16, %s17
      $region28: #{simsiam_forward.2} parent=19 // pred_fallthru
        _
    $region20: #{simsiam_forward.2} parent=5 // pred_fallthru
      _
    %p174 = scmp.le.s32.totalorder 1, %s9
    %p175 = scmp.lt.s32.totalorder %s9, 3
    %p176 = pnand %p174, %p175
    %p177 = pneg %p176
    // Predicated region
    $region29: #{simsiam_forward.2} parent=5 // pred_check
      _
    $region30: #{simsiam_forward.2} parent=5 // pred_check_branch
      %179 = sbr.rel (%p176) target = $region32
    $region31: #{simsiam_forward.2} parent=5 // pred_region
      %s180 = ssub.s32 %s9, 1
      %s181 = smul.u32 16, %s19
      %p182 = scmp.lt.s32.totalorder %s18, 1
      %s183 = scalar_select %p182, %s18, 1
      %p184 = scmp.lt.s32.totalorder %s181, 15
      %s185 = scalar_select %p184, %s181, 15
      %s186 = smul.addr %s183, 16
      %s187 = sadd.s32 %s185, %s186
      %s188 = smul.addr %s187, 4
      %s189 = scalar_lea.vmem %s0, %s188
      %p190 = pneg %p49
      %p191 = pneg %p46
      %s192 = smul.u32 16, %s19
      %p193 = scmp.lt.s32.totalorder %s18, 1
      %s194 = scalar_select %p193, %s18, 1
      %p195 = scmp.lt.s32.totalorder %s192, 15
      %s196 = scalar_select %p195, %s192, 15
      %s197 = smul.addr %s194, 16
      %s198 = sadd.s32 %s196, %s197
      %s199 = smul.addr %s198, 4
      %s200 = scalar_lea.vmem %s1, %s199
      %p201 = pneg %p77
      %p202 = pneg %p74
      %p203 = pneg %p98
      %p204 = pneg %p95
      %p205 = pneg %p126
      %p206 = pneg %p123
      %s207 = smul.u32 2, %s19
      %p208 = scmp.lt.s32.totalorder %s18, 1
      %s209 = scalar_select %p208, %s18, 1
      %p210 = scmp.lt.s32.totalorder %s207, 1
      %s211 = scalar_select %p210, %s207, 1
      %s212 = smul.addr %s209, 2
      %s213 = sadd.s32 %s211, %s212
      %s214 = smul.addr %s213, 8
      %s215 = scalar_lea.vmem %s3, %s214
      %s216 = smul.u32 16, %s19
      %p217 = scmp.lt.s32.totalorder %s18, 1
      %s218 = scalar_select %p217, %s18, 1
      %p219 = scmp.lt.s32.totalorder %s216, 15
      %s220 = scalar_select %p219, %s216, 15
      %s221 = smul.addr %s218, 16
      %s222 = sadd.s32 %s220, %s221
      %s223 = smul.addr %s222, 4
      %s224 = scalar_lea.vmem %s0, %s223
      %s225 = smul.u32 16, %s19
      %s226 = smul.u32 16, %s19
      %p227 = scmp.lt.s32.totalorder %s18, 1
      %s228 = scalar_select %p227, %s18, 1
      %p229 = scmp.lt.s32.totalorder %s226, 15
      %s230 = scalar_select %p229, %s226, 15
      %s231 = smul.addr %s228, 16
      %s232 = sadd.s32 %s230, %s231
      %s233 = smul.addr %s232, 4
      %s234 = scalar_lea.vmem %s1, %s233
      %s235 = smul.u32 16, %s19
      %s236 = smul.u32 2, %s19
      %p237 = scmp.lt.s32.totalorder %s18, 1
      %s238 = scalar_select %p237, %s18, 1
      %p239 = scmp.lt.s32.totalorder %s236, 1
      %s240 = scalar_select %p239, %s236, 1
      %s241 = smul.addr %s238, 2
      %s242 = sadd.s32 %s240, %s241
      %s243 = smul.addr %s242, 8
      %s244 = scalar_lea.vmem %s3, %s243
      %s245 = smul.u32 2, %s19
      %v247 = vld [vmem:[%s234] sm:$0xf]
      %v248 = vld [vmem:[%s234 + $0x4] sm:$0xf]
      %v249 = vld [vmem:[%s234 + $0x8] sm:$0xf]
      %v250 = vld [vmem:[%s234 + $0xc] sm:$0xf]
      %v251 = vld [vmem:[%s234 + $0x10] sm:$0xf]
      %v252 = vld [vmem:[%s234 + $0x14] sm:$0xf]
      %v253 = vld [vmem:[%s234 + $0x18] sm:$0xf]
      %v254 = vld [vmem:[%s234 + $0x1c] sm:$0xf]
      %v255 = vld [vmem:[%s234 + $0x20] sm:$0xf]
      %v256 = vld [vmem:[%s234 + $0x24] sm:$0xf]
      %v257 = vld [vmem:[%s234 + $0x28] sm:$0xf]
      %v258 = vld [vmem:[%s234 + $0x2c] sm:$0xf]
      %v259 = vld [vmem:[%s234 + $0x30] sm:$0xf]
      %v260 = vld [vmem:[%s234 + $0x34] sm:$0xf]
      %v261 = vld [vmem:[%s234 + $0x38] sm:$0xf]
      %v262 = vld [vmem:[%s234 + $0x3c] sm:$0xf]
      %v263 = vld [vmem:[%s224] sm:$0xf]
      %v264 = vld [vmem:[%s224 + $0x4] sm:$0xf]
      %v265 = vld [vmem:[%s224 + $0x8] sm:$0xf]
      %v266 = vld [vmem:[%s224 + $0xc] sm:$0xf]
      %v267 = vld [vmem:[%s224 + $0x10] sm:$0xf]
      %v268 = vld [vmem:[%s224 + $0x14] sm:$0xf]
      %v269 = vld [vmem:[%s224 + $0x18] sm:$0xf]
      %v270 = vld [vmem:[%s224 + $0x1c] sm:$0xf]
      %v271 = vld [vmem:[%s224 + $0x20] sm:$0xf]
      %v272 = vld [vmem:[%s224 + $0x24] sm:$0xf]
      %v273 = vld [vmem:[%s224 + $0x28] sm:$0xf]
      %v274 = vld [vmem:[%s224 + $0x2c] sm:$0xf]
      %v275 = vld [vmem:[%s224 + $0x30] sm:$0xf]
      %v276 = vld [vmem:[%s224 + $0x34] sm:$0xf]
      %v277 = vld [vmem:[%s224 + $0x38] sm:$0xf]
      %v278 = vld [vmem:[%s224 + $0x3c] sm:$0xf]
      %vm279 = vcmask 64512
      %v281 = vsel %vm279, %v247, 0
      %vm283 = vcmask 1043456
      %v285 = vsel %vm283, %v263, 0
      %287 = vmatprep.subr.bf16.mxu0 0
      %288 = vmatpush1.bf16.msra.mxu0 %v285
      %289 = vmatprep.subr.bf16.mxu0 0
      %290 = vmatpush1.bf16.msra.mxu0 0
      %291 = vmatprep.subr.bf16.mxu0 0
      %292 = vmatpush1.bf16.msra.mxu0 0
      %293 = vmatprep.subr.bf16.mxu0 0
      %294 = vmatpush1.bf16.msra.mxu0 0
      %295 = vmatprep.subr.bf16.mxu0 0
      %296 = vmatpush1.bf16.msra.mxu0 0
      %297 = vmatprep.subr.bf16.mxu0 0
      %298 = vmatpush1.bf16.msra.mxu0 0
      %299 = vmatprep.subr.bf16.mxu0 0
      %300 = vmatpush1.bf16.msra.mxu0 0
      %301 = vmatprep.subr.bf16.mxu0 0
      %302 = vmatpush1.bf16.msra.mxu0 0
      %303 = vmatprep.subr.bf16.mxu0 0
      %304 = vmatpush1.bf16.msra.mxu0 0
      %305 = vmatprep.subr.bf16.mxu0 0
      %306 = vmatpush1.bf16.msra.mxu0 0
      %307 = vmatprep.subr.bf16.mxu0 0
      %308 = vmatpush1.bf16.msra.mxu0 0
      %309 = vmatprep.subr.bf16.mxu0 0
      %310 = vmatpush1.bf16.msra.mxu0 0
      %311 = vmatprep.subr.bf16.mxu0 0
      %312 = vmatpush1.bf16.msra.mxu0 0
      %313 = vmatprep.subr.bf16.mxu0 0
      %314 = vmatpush1.bf16.msra.mxu0 0
      %315 = vmatprep.subr.bf16.mxu0 0
      %316 = vmatpush1.bf16.msra.mxu0 0
      %317 = vmatprep.subr.bf16.mxu0 0
      %318 = vmatpush1.bf16.msra.mxu0 0
      %319 = vmatprep.mubr.bf16.mxu0 0
      %320 = vmatmul.mubr.bf16.gmra.mrb[0].mxu0 %v281
      %v321 = vpop.f32.mrb[0].mxu0
      %v322 = vadd.f32 0.0, %v321
      %v323 = vpop.f32.mrb[0].mxu0
      %v324 = vpop.f32.mrb[0].mxu0
      %v325 = vpop.f32.mrb[0].mxu0
      %326 = vdwg.mxu0
      %v328 = vsel %vm279, %v248, 0
      %v331 = vsel %vm283, %v264, 0
      %333 = vmatprep.subr.bf16.mxu0 0
      %334 = vmatpush1.bf16.msra.mxu0 %v331
      %335 = vmatprep.subr.bf16.mxu0 0
      %336 = vmatpush1.bf16.msra.mxu0 0
      %337 = vmatprep.subr.bf16.mxu0 0
      %338 = vmatpush1.bf16.msra.mxu0 0
      %339 = vmatprep.subr.bf16.mxu0 0
      %340 = vmatpush1.bf16.msra.mxu0 0
      %341 = vmatprep.subr.bf16.mxu0 0
      %342 = vmatpush1.bf16.msra.mxu0 0
      %343 = vmatprep.subr.bf16.mxu0 0
      %344 = vmatpush1.bf16.msra.mxu0 0
      %345 = vmatprep.subr.bf16.mxu0 0
      %346 = vmatpush1.bf16.msra.mxu0 0
      %347 = vmatprep.subr.bf16.mxu0 0
      %348 = vmatpush1.bf16.msra.mxu0 0
      %349 = vmatprep.subr.bf16.mxu0 0
      %350 = vmatpush1.bf16.msra.mxu0 0
      %351 = vmatprep.subr.bf16.mxu0 0
      %352 = vmatpush1.bf16.msra.mxu0 0
      %353 = vmatprep.subr.bf16.mxu0 0
      %354 = vmatpush1.bf16.msra.mxu0 0
      %355 = vmatprep.subr.bf16.mxu0 0
      %356 = vmatpush1.bf16.msra.mxu0 0
      %357 = vmatprep.subr.bf16.mxu0 0
      %358 = vmatpush1.bf16.msra.mxu0 0
      %359 = vmatprep.subr.bf16.mxu0 0
      %360 = vmatpush1.bf16.msra.mxu0 0
      %361 = vmatprep.subr.bf16.mxu0 0
      %362 = vmatpush1.bf16.msra.mxu0 0
      %363 = vmatprep.subr.bf16.mxu0 0
      %364 = vmatpush1.bf16.msra.mxu0 0
      %365 = vmatprep.mubr.bf16.mxu0 0
      %366 = vmatmul.mubr.bf16.gmra.mrb[0].mxu0 %v328
      %v367 = vpop.f32.mrb[0].mxu0
      %v368 = vadd.f32 0.0, %v367
      %v369 = vpop.f32.mrb[0].mxu0
      %v370 = vpop.f32.mrb[0].mxu0
      %v371 = vpop.f32.mrb[0].mxu0
      %372 = vdwg.mxu0
      %v374 = vsel %vm279, %v249, 0
      %v377 = vsel %vm283, %v265, 0
      %379 = vmatprep.subr.bf16.mxu0 0
      %380 = vmatpush1.bf16.msra.mxu0 %v377
      %381 = vmatprep.subr.bf16.mxu0 0
      %382 = vmatpush1.bf16.msra.mxu0 0
      %383 = vmatprep.subr.bf16.mxu0 0
      %384 = vmatpush1.bf16.msra.mxu0 0
      %385 = vmatprep.subr.bf16.mxu0 0
      %386 = vmatpush1.bf16.msra.mxu0 0
      %387 = vmatprep.subr.bf16.mxu0 0
      %388 = vmatpush1.bf16.msra.mxu0 0
      %389 = vmatprep.subr.bf16.mxu0 0
      %390 = vmatpush1.bf16.msra.mxu0 0
      %391 = vmatprep.subr.bf16.mxu0 0
      %392 = vmatpush1.bf16.msra.mxu0 0
      %393 = vmatprep.subr.bf16.mxu0 0
      %394 = vmatpush1.bf16.msra.mxu0 0
      %395 = vmatprep.subr.bf16.mxu0 0
      %396 = vmatpush1.bf16.msra.mxu0 0
      %397 = vmatprep.subr.bf16.mxu0 0
      %398 = vmatpush1.bf16.msra.mxu0 0
      %399 = vmatprep.subr.bf16.mxu0 0
      %400 = vmatpush1.bf16.msra.mxu0 0
      %401 = vmatprep.subr.bf16.mxu0 0
      %402 = vmatpush1.bf16.msra.mxu0 0
      %403 = vmatprep.subr.bf16.mxu0 0
      %404 = vmatpush1.bf16.msra.mxu0 0
      %405 = vmatprep.subr.bf16.mxu0 0
      %406 = vmatpush1.bf16.msra.mxu0 0
      %407 = vmatprep.subr.bf16.mxu0 0
      %408 = vmatpush1.bf16.msra.mxu0 0
      %409 = vmatprep.subr.bf16.mxu0 0
      %410 = vmatpush1.bf16.msra.mxu0 0
      %411 = vmatprep.mubr.bf16.mxu0 0
      %412 = vmatmul.mubr.bf16.gmra.mrb[0].mxu0 %v374
      %v413 = vpop.f32.mrb[0].mxu0
      %v414 = vadd.f32 0.0, %v413
      %v415 = vpop.f32.mrb[0].mxu0
      %v416 = vpop.f32.mrb[0].mxu0
      %v417 = vpop.f32.mrb[0].mxu0
      %418 = vdwg.mxu0
      %v420 = vsel %vm279, %v250, 0
      %v423 = vsel %vm283, %v266, 0
      %425 = vmatprep.subr.bf16.mxu0 0
      %426 = vmatpush1.bf16.msra.mxu0 %v423
      %427 = vmatprep.subr.bf16.mxu0 0
      %428 = vmatpush1.bf16.msra.mxu0 0
      %429 = vmatprep.subr.bf16.mxu0 0
      %430 = vmatpush1.bf16.msra.mxu0 0
      %431 = vmatprep.subr.bf16.mxu0 0
      %432 = vmatpush1.bf16.msra.mxu0 0
      %433 = vmatprep.subr.bf16.mxu0 0
      %434 = vmatpush1.bf16.msra.mxu0 0
      %435 = vmatprep.subr.bf16.mxu0 0
      %436 = vmatpush1.bf16.msra.mxu0 0
      %437 = vmatprep.subr.bf16.mxu0 0
      %438 = vmatpush1.bf16.msra.mxu0 0
      %439 = vmatprep.subr.bf16.mxu0 0
      %440 = vmatpush1.bf16.msra.mxu0 0
      %441 = vmatprep.subr.bf16.mxu0 0
      %442 = vmatpush1.bf16.msra.mxu0 0
      %443 = vmatprep.subr.bf16.mxu0 0
      %444 = vmatpush1.bf16.msra.mxu0 0
      %445 = vmatprep.subr.bf16.mxu0 0
      %446 = vmatpush1.bf16.msra.mxu0 0
      %447 = vmatprep.subr.bf16.mxu0 0
      %448 = vmatpush1.bf16.msra.mxu0 0
      %449 = vmatprep.subr.bf16.mxu0 0
      %450 = vmatpush1.bf16.msra.mxu0 0
      %451 = vmatprep.subr.bf16.mxu0 0
      %452 = vmatpush1.bf16.msra.mxu0 0
      %453 = vmatprep.subr.bf16.mxu0 0
      %454 = vmatpush1.bf16.msra.mxu0 0
      %455 = vmatprep.subr.bf16.mxu0 0
      %456 = vmatpush1.bf16.msra.mxu0 0
      %457 = vmatprep.mubr.bf16.mxu0 0
      %458 = vmatmul.mubr.bf16.gmra.mrb[0].mxu0 %v420
      %v459 = vpop.f32.mrb[0].mxu0
      %v460 = vadd.f32 0.0, %v459
      %v461 = vpop.f32.mrb[0].mxu0
      %v462 = vpop.f32.mrb[0].mxu0
      %v463 = vpop.f32.mrb[0].mxu0
      %464 = vdwg.mxu0
      %v466 = vsel %vm279, %v251, 0
      %v469 = vsel %vm283, %v267, 0
      %471 = vmatprep.subr.bf16.mxu0 0
      %472 = vmatpush1.bf16.msra.mxu0 %v469
      %473 = vmatprep.subr.bf16.mxu0 0
      %474 = vmatpush1.bf16.msra.mxu0 0
      %475 = vmatprep.subr.bf16.mxu0 0
      %476 = vmatpush1.bf16.msra.mxu0 0
      %477 = vmatprep.subr.bf16.mxu0 0
      %478 = vmatpush1.bf16.msra.mxu0 0
      %479 = vmatprep.subr.bf16.mxu0 0
      %480 = vmatpush1.bf16.msra.mxu0 0
      %481 = vmatprep.subr.bf16.mxu0 0
      %482 = vmatpush1.bf16.msra.mxu0 0
      %483 = vmatprep.subr.bf16.mxu0 0
      %484 = vmatpush1.bf16.msra.mxu0 0
      %485 = vmatprep.subr.bf16.mxu0 0
      %486 = vmatpush1.bf16.msra.mxu0 0
      %487 = vmatprep.subr.bf16.mxu0 0
      %488 = vmatpush1.bf16.msra.mxu0 0
      %489 = vmatprep.subr.bf16.mxu0 0
      %490 = vmatpush1.bf16.msra.mxu0 0
      %491 = vmatprep.subr.bf16.mxu0 0
      %492 = vmatpush1.bf16.msra.mxu0 0
      %493 = vmatprep.subr.bf16.mxu0 0
      %494 = vmatpush1.bf16.msra.mxu0 0
      %495 = vmatprep.subr.bf16.mxu0 0
      %496 = vmatpush1.bf16.msra.mxu0 0
      %497 = vmatprep.subr.bf16.mxu0 0
      %498 = vmatpush1.bf16.msra.mxu0 0
      %499 = vmatprep.subr.bf16.mxu0 0
      %500 = vmatpush1.bf16.msra.mxu0 0
      %501 = vmatprep.subr.bf16.mxu0 0
      %502 = vmatpush1.bf16.msra.mxu0 0
      %503 = vmatprep.mubr.bf16.mxu0 0
      %504 = vmatmul.mubr.bf16.gmra.mrb[0].mxu0 %v466
      %v505 = vpop.f32.mrb[0].mxu0
      %v506 = vadd.f32 0.0, %v505
      %v507 = vpop.f32.mrb[0].mxu0
      %v508 = vpop.f32.mrb[0].mxu0
      %v509 = vpop.f32.mrb[0].mxu0
      %510 = vdwg.mxu0
      %v512 = vsel %vm279, %v252, 0
      %v515 = vsel %vm283, %v268, 0
      %517 = vmatprep.subr.bf16.mxu0 0
      %518 = vmatpush1.bf16.msra.mxu0 %v515
      %519 = vmatprep.subr.bf16.mxu0 0
      %520 = vmatpush1.bf16.msra.mxu0 0
      %521 = vmatprep.subr.bf16.mxu0 0
      %522 = vmatpush1.bf16.msra.mxu0 0
      %523 = vmatprep.subr.bf16.mxu0 0
      %524 = vmatpush1.bf16.msra.mxu0 0
      %525 = vmatprep.subr.bf16.mxu0 0
      %526 = vmatpush1.bf16.msra.mxu0 0
      %527 = vmatprep.subr.bf16.mxu0 0
      %528 = vmatpush1.bf16.msra.mxu0 0
      %529 = vmatprep.subr.bf16.mxu0 0
      %530 = vmatpush1.bf16.msra.mxu0 0
      %531 = vmatprep.subr.bf16.mxu0 0
      %532 = vmatpush1.bf16.msra.mxu0 0
      %533 = vmatprep.subr.bf16.mxu0 0
      %534 = vmatpush1.bf16.msra.mxu0 0
      %535 = vmatprep.subr.bf16.mxu0 0
      %536 = vmatpush1.bf16.msra.mxu0 0
      %537 = vmatprep.subr.bf16.mxu0 0
      %538 = vmatpush1.bf16.msra.mxu0 0
      %539 = vmatprep.subr.bf16.mxu0 0
      %540 = vmatpush1.bf16.msra.mxu0 0
      %541 = vmatprep.subr.bf16.mxu0 0
      %542 = vmatpush1.bf16.msra.mxu0 0
      %543 = vmatprep.subr.bf16.mxu0 0
      %544 = vmatpush1.bf16.msra.mxu0 0
      %545 = vmatprep.subr.bf16.mxu0 0
      %546 = vmatpush1.bf16.msra.mxu0 0
      %547 = vmatprep.subr.bf16.mxu0 0
      %548 = vmatpush1.bf16.msra.mxu0 0
      %549 = vmatprep.mubr.bf16.mxu0 0
      %550 = vmatmul.mubr.bf16.gmra.mrb[0].mxu0 %v512
      %v551 = vpop.f32.mrb[0].mxu0
      %v552 = vadd.f32 0.0, %v551
      %v553 = vpop.f32.mrb[0].mxu0
      %v554 = vpop.f32.mrb[0].mxu0
      %v555 = vpop.f32.mrb[0].mxu0
      %556 = vdwg.mxu0
      %v558 = vsel %vm279, %v253, 0
      %v561 = vsel %vm283, %v269, 0
      %563 = vmatprep.subr.bf16.mxu0 0
      %564 = vmatpush1.bf16.msra.mxu0 %v561
      %565 = vmatprep.subr.bf16.mxu0 0
      %566 = vmatpush1.bf16.msra.mxu0 0
      %567 = vmatprep.subr.bf16.mxu0 0
      %568 = vmatpush1.bf16.msra.mxu0 0
      %569 = vmatprep.subr.bf16.mxu0 0
      %570 = vmatpush1.bf16.msra.mxu0 0
      %571 = vmatprep.subr.bf16.mxu0 0
      %572 = vmatpush1.bf16.msra.mxu0 0
      %573 = vmatprep.subr.bf16.mxu0 0
      %574 = vmatpush1.bf16.msra.mxu0 0
      %575 = vmatprep.subr.bf16.mxu0 0
      %576 = vmatpush1.bf16.msra.mxu0 0
      %577 = vmatprep.subr.bf16.mxu0 0
      %578 = vmatpush1.bf16.msra.mxu0 0
      %579 = vmatprep.subr.bf16.mxu0 0
      %580 = vmatpush1.bf16.msra.mxu0 0
      %581 = vmatprep.subr.bf16.mxu0 0
      %582 = vmatpush1.bf16.msra.mxu0 0
      %583 = vmatprep.subr.bf16.mxu0 0
      %584 = vmatpush1.bf16.msra.mxu0 0
      %585 = vmatprep.subr.bf16.mxu0 0
      %586 = vmatpush1.bf16.msra.mxu0 0
      %587 = vmatprep.subr.bf16.mxu0 0
      %588 = vmatpush1.bf16.msra.mxu0 0
      %589 = vmatprep.subr.bf16.mxu0 0
      %590 = vmatpush1.bf16.msra.mxu0 0
      %591 = vmatprep.subr.bf16.mxu0 0
      %592 = vmatpush1.bf16.msra.mxu0 0
      %593 = vmatprep.subr.bf16.mxu0 0
      %594 = vmatpush1.bf16.msra.mxu0 0
      %595 = vmatprep.mubr.bf16.mxu0 0
      %596 = vmatmul.mubr.bf16.gmra.mrb[0].mxu0 %v558
      %v597 = vpop.f32.mrb[0].mxu0
      %v598 = vadd.f32 0.0, %v597
      %v599 = vpop.f32.mrb[0].mxu0
      %v600 = vpop.f32.mrb[0].mxu0
      %v601 = vpop.f32.mrb[0].mxu0
      %602 = vdwg.mxu0
      %v604 = vsel %vm279, %v254, 0
      %v607 = vsel %vm283, %v270, 0
      %609 = vmatprep.subr.bf16.mxu0 0
      %610 = vmatpush1.bf16.msra.mxu0 %v607
      %611 = vmatprep.subr.bf16.mxu0 0
      %612 = vmatpush1.bf16.msra.mxu0 0
      %613 = vmatprep.subr.bf16.mxu0 0
      %614 = vmatpush1.bf16.msra.mxu0 0
      %615 = vmatprep.subr.bf16.mxu0 0
      %616 = vmatpush1.bf16.msra.mxu0 0
      %617 = vmatprep.subr.bf16.mxu0 0
      %618 = vmatpush1.bf16.msra.mxu0 0
      %619 = vmatprep.subr.bf16.mxu0 0
      %620 = vmatpush1.bf16.msra.mxu0 0
      %621 = vmatprep.subr.bf16.mxu0 0
      %622 = vmatpush1.bf16.msra.mxu0 0
      %623 = vmatprep.subr.bf16.mxu0 0
      %624 = vmatpush1.bf16.msra.mxu0 0
      %625 = vmatprep.subr.bf16.mxu0 0
      %626 = vmatpush1.bf16.msra.mxu0 0
      %627 = vmatprep.subr.bf16.mxu0 0
      %628 = vmatpush1.bf16.msra.mxu0 0
      %629 = vmatprep.subr.bf16.mxu0 0
      %630 = vmatpush1.bf16.msra.mxu0 0
      %631 = vmatprep.subr.bf16.mxu0 0
      %632 = vmatpush1.bf16.msra.mxu0 0
      %633 = vmatprep.subr.bf16.mxu0 0
      %634 = vmatpush1.bf16.msra.mxu0 0
      %635 = vmatprep.subr.bf16.mxu0 0
      %636 = vmatpush1.bf16.msra.mxu0 0
      %637 = vmatprep.subr.bf16.mxu0 0
      %638 = vmatpush1.bf16.msra.mxu0 0
      %639 = vmatprep.subr.bf16.mxu0 0
      %640 = vmatpush1.bf16.msra.mxu0 0
      %641 = vmatprep.mubr.bf16.mxu0 0
      %642 = vmatmul.mubr.bf16.gmra.mrb[0].mxu0 %v604
      %v643 = vpop.f32.mrb[0].mxu0
      %v644 = vadd.f32 0.0, %v643
      %v645 = vpop.f32.mrb[0].mxu0
      %v646 = vpop.f32.mrb[0].mxu0
      %v647 = vpop.f32.mrb[0].mxu0
      %648 = vdwg.mxu0
      %v650 = vsel %vm279, %v255, 0
      %v653 = vsel %vm283, %v271, 0
      %655 = vmatprep.subr.bf16.mxu0 0
      %656 = vmatpush1.bf16.msra.mxu0 %v653
      %657 = vmatprep.subr.bf16.mxu0 0
      %658 = vmatpush1.bf16.msra.mxu0 0
      %659 = vmatprep.subr.bf16.mxu0 0
      %660 = vmatpush1.bf16.msra.mxu0 0
      %661 = vmatprep.subr.bf16.mxu0 0
      %662 = vmatpush1.bf16.msra.mxu0 0
      %663 = vmatprep.subr.bf16.mxu0 0
      %664 = vmatpush1.bf16.msra.mxu0 0
      %665 = vmatprep.subr.bf16.mxu0 0
      %666 = vmatpush1.bf16.msra.mxu0 0
      %667 = vmatprep.subr.bf16.mxu0 0
      %668 = vmatpush1.bf16.msra.mxu0 0
      %669 = vmatprep.subr.bf16.mxu0 0
      %670 = vmatpush1.bf16.msra.mxu0 0
      %671 = vmatprep.subr.bf16.mxu0 0
      %672 = vmatpush1.bf16.msra.mxu0 0
      %673 = vmatprep.subr.bf16.mxu0 0
      %674 = vmatpush1.bf16.msra.mxu0 0
      %675 = vmatprep.subr.bf16.mxu0 0
      %676 = vmatpush1.bf16.msra.mxu0 0
      %677 = vmatprep.subr.bf16.mxu0 0
      %678 = vmatpush1.bf16.msra.mxu0 0
      %679 = vmatprep.subr.bf16.mxu0 0
      %680 = vmatpush1.bf16.msra.mxu0 0
      %681 = vmatprep.subr.bf16.mxu0 0
      %682 = vmatpush1.bf16.msra.mxu0 0
      %683 = vmatprep.subr.bf16.mxu0 0
      %684 = vmatpush1.bf16.msra.mxu0 0
      %685 = vmatprep.subr.bf16.mxu0 0
      %686 = vmatpush1.bf16.msra.mxu0 0
      %687 = vmatprep.mubr.bf16.mxu0 0
      %688 = vmatmul.mubr.bf16.gmra.mrb[0].mxu0 %v650
      %v689 = vpop.f32.mrb[0].mxu0
      %v690 = vadd.f32 0.0, %v689
      %v691 = vpop.f32.mrb[0].mxu0
      %v692 = vpop.f32.mrb[0].mxu0
      %v693 = vpop.f32.mrb[0].mxu0
      %694 = vdwg.mxu0
      %v696 = vsel %vm279, %v256, 0
      %v699 = vsel %vm283, %v272, 0
      %701 = vmatprep.subr.bf16.mxu0 0
      %702 = vmatpush1.bf16.msra.mxu0 %v699
      %703 = vmatprep.subr.bf16.mxu0 0
      %704 = vmatpush1.bf16.msra.mxu0 0
      %705 = vmatprep.subr.bf16.mxu0 0
      %706 = vmatpush1.bf16.msra.mxu0 0
      %707 = vmatprep.subr.bf16.mxu0 0
      %708 = vmatpush1.bf16.msra.mxu0 0
      %709 = vmatprep.subr.bf16.mxu0 0
      %710 = vmatpush1.bf16.msra.mxu0 0
      %711 = vmatprep.subr.bf16.mxu0 0
      %712 = vmatpush1.bf16.msra.mxu0 0
      %713 = vmatprep.subr.bf16.mxu0 0
      %714 = vmatpush1.bf16.msra.mxu0 0
      %715 = vmatprep.subr.bf16.mxu0 0
      %716 = vmatpush1.bf16.msra.mxu0 0
      %717 = vmatprep.subr.bf16.mxu0 0
      %718 = vmatpush1.bf16.msra.mxu0 0
      %719 = vmatprep.subr.bf16.mxu0 0
      %720 = vmatpush1.bf16.msra.mxu0 0
      %721 = vmatprep.subr.bf16.mxu0 0
      %722 = vmatpush1.bf16.msra.mxu0 0
      %723 = vmatprep.subr.bf16.mxu0 0
      %724 = vmatpush1.bf16.msra.mxu0 0
      %725 = vmatprep.subr.bf16.mxu0 0
      %726 = vmatpush1.bf16.msra.mxu0 0
      %727 = vmatprep.subr.bf16.mxu0 0
      %728 = vmatpush1.bf16.msra.mxu0 0
      %729 = vmatprep.subr.bf16.mxu0 0
      %730 = vmatpush1.bf16.msra.mxu0 0
      %731 = vmatprep.subr.bf16.mxu0 0
      %732 = vmatpush1.bf16.msra.mxu0 0
      %733 = vmatprep.mubr.bf16.mxu0 0
      %734 = vmatmul.mubr.bf16.gmra.mrb[0].mxu0 %v696
      %v735 = vpop.f32.mrb[0].mxu0
      %v736 = vadd.f32 0.0, %v735
      %v737 = vpop.f32.mrb[0].mxu0
      %v738 = vpop.f32.mrb[0].mxu0
      %v739 = vpop.f32.mrb[0].mxu0
      %740 = vdwg.mxu0
      %v742 = vsel %vm279, %v257, 0
      %v745 = vsel %vm283, %v273, 0
      %747 = vmatprep.subr.bf16.mxu0 0
      %748 = vmatpush1.bf16.msra.mxu0 %v745
      %749 = vmatprep.subr.bf16.mxu0 0
      %750 = vmatpush1.bf16.msra.mxu0 0
      %751 = vmatprep.subr.bf16.mxu0 0
      %752 = vmatpush1.bf16.msra.mxu0 0
      %753 = vmatprep.subr.bf16.mxu0 0
      %754 = vmatpush1.bf16.msra.mxu0 0
      %755 = vmatprep.subr.bf16.mxu0 0
      %756 = vmatpush1.bf16.msra.mxu0 0
      %757 = vmatprep.subr.bf16.mxu0 0
      %758 = vmatpush1.bf16.msra.mxu0 0
      %759 = vmatprep.subr.bf16.mxu0 0
      %760 = vmatpush1.bf16.msra.mxu0 0
      %761 = vmatprep.subr.bf16.mxu0 0
      %762 = vmatpush1.bf16.msra.mxu0 0
      %763 = vmatprep.subr.bf16.mxu0 0
      %764 = vmatpush1.bf16.msra.mxu0 0
      %765 = vmatprep.subr.bf16.mxu0 0
      %766 = vmatpush1.bf16.msra.mxu0 0
      %767 = vmatprep.subr.bf16.mxu0 0
      %768 = vmatpush1.bf16.msra.mxu0 0
      %769 = vmatprep.subr.bf16.mxu0 0
      %770 = vmatpush1.bf16.msra.mxu0 0
      %771 = vmatprep.subr.bf16.mxu0 0
      %772 = vmatpush1.bf16.msra.mxu0 0
      %773 = vmatprep.subr.bf16.mxu0 0
      %774 = vmatpush1.bf16.msra.mxu0 0
      %775 = vmatprep.subr.bf16.mxu0 0
      %776 = vmatpush1.bf16.msra.mxu0 0
      %777 = vmatprep.subr.bf16.mxu0 0
      %778 = vmatpush1.bf16.msra.mxu0 0
      %779 = vmatprep.mubr.bf16.mxu0 0
      %780 = vmatmul.mubr.bf16.gmra.mrb[0].mxu0 %v742
      %v781 = vpop.f32.mrb[0].mxu0
      %v782 = vadd.f32 0.0, %v781
      %v783 = vpop.f32.mrb[0].mxu0
      %v784 = vpop.f32.mrb[0].mxu0
      %v785 = vpop.f32.mrb[0].mxu0
      %786 = vdwg.mxu0
      %v788 = vsel %vm279, %v258, 0
      %v791 = vsel %vm283, %v274, 0
      %793 = vmatprep.subr.bf16.mxu0 0
      %794 = vmatpush1.bf16.msra.mxu0 %v791
      %795 = vmatprep.subr.bf16.mxu0 0
      %796 = vmatpush1.bf16.msra.mxu0 0
      %797 = vmatprep.subr.bf16.mxu0 0
      %798 = vmatpush1.bf16.msra.mxu0 0
      %799 = vmatprep.subr.bf16.mxu0 0
      %800 = vmatpush1.bf16.msra.mxu0 0
      %801 = vmatprep.subr.bf16.mxu0 0
      %802 = vmatpush1.bf16.msra.mxu0 0
      %803 = vmatprep.subr.bf16.mxu0 0
      %804 = vmatpush1.bf16.msra.mxu0 0
      %805 = vmatprep.subr.bf16.mxu0 0
      %806 = vmatpush1.bf16.msra.mxu0 0
      %807 = vmatprep.subr.bf16.mxu0 0
      %808 = vmatpush1.bf16.msra.mxu0 0
      %809 = vmatprep.subr.bf16.mxu0 0
      %810 = vmatpush1.bf16.msra.mxu0 0
      %811 = vmatprep.subr.bf16.mxu0 0
      %812 = vmatpush1.bf16.msra.mxu0 0
      %813 = vmatprep.subr.bf16.mxu0 0
      %814 = vmatpush1.bf16.msra.mxu0 0
      %815 = vmatprep.subr.bf16.mxu0 0
      %816 = vmatpush1.bf16.msra.mxu0 0
      %817 = vmatprep.subr.bf16.mxu0 0
      %818 = vmatpush1.bf16.msra.mxu0 0
      %819 = vmatprep.subr.bf16.mxu0 0
      %820 = vmatpush1.bf16.msra.mxu0 0
      %821 = vmatprep.subr.bf16.mxu0 0
      %822 = vmatpush1.bf16.msra.mxu0 0
      %823 = vmatprep.subr.bf16.mxu0 0
      %824 = vmatpush1.bf16.msra.mxu0 0
      %825 = vmatprep.mubr.bf16.mxu0 0
      %826 = vmatmul.mubr.bf16.gmra.mrb[0].mxu0 %v788
      %v827 = vpop.f32.mrb[0].mxu0
      %v828 = vadd.f32 0.0, %v827
      %v829 = vpop.f32.mrb[0].mxu0
      %v830 = vpop.f32.mrb[0].mxu0
      %v831 = vpop.f32.mrb[0].mxu0
      %832 = vdwg.mxu0
      %v834 = vsel %vm279, %v259, 0
      %v837 = vsel %vm283, %v275, 0
      %839 = vmatprep.subr.bf16.mxu0 0
      %840 = vmatpush1.bf16.msra.mxu0 %v837
      %841 = vmatprep.subr.bf16.mxu0 0
      %842 = vmatpush1.bf16.msra.mxu0 0
      %843 = vmatprep.subr.bf16.mxu0 0
      %844 = vmatpush1.bf16.msra.mxu0 0
      %845 = vmatprep.subr.bf16.mxu0 0
      %846 = vmatpush1.bf16.msra.mxu0 0
      %847 = vmatprep.subr.bf16.mxu0 0
      %848 = vmatpush1.bf16.msra.mxu0 0
      %849 = vmatprep.subr.bf16.mxu0 0
      %850 = vmatpush1.bf16.msra.mxu0 0
      %851 = vmatprep.subr.bf16.mxu0 0
      %852 = vmatpush1.bf16.msra.mxu0 0
      %853 = vmatprep.subr.bf16.mxu0 0
      %854 = vmatpush1.bf16.msra.mxu0 0
      %855 = vmatprep.subr.bf16.mxu0 0
      %856 = vmatpush1.bf16.msra.mxu0 0
      %857 = vmatprep.subr.bf16.mxu0 0
      %858 = vmatpush1.bf16.msra.mxu0 0
      %859 = vmatprep.subr.bf16.mxu0 0
      %860 = vmatpush1.bf16.msra.mxu0 0
      %861 = vmatprep.subr.bf16.mxu0 0
      %862 = vmatpush1.bf16.msra.mxu0 0
      %863 = vmatprep.subr.bf16.mxu0 0
      %864 = vmatpush1.bf16.msra.mxu0 0
      %865 = vmatprep.subr.bf16.mxu0 0
      %866 = vmatpush1.bf16.msra.mxu0 0
      %867 = vmatprep.subr.bf16.mxu0 0
      %868 = vmatpush1.bf16.msra.mxu0 0
      %869 = vmatprep.subr.bf16.mxu0 0
      %870 = vmatpush1.bf16.msra.mxu0 0
      %871 = vmatprep.mubr.bf16.mxu0 0
      %872 = vmatmul.mubr.bf16.gmra.mrb[0].mxu0 %v834
      %v873 = vpop.f32.mrb[0].mxu0
      %v874 = vadd.f32 0.0, %v873
      %v875 = vpop.f32.mrb[0].mxu0
      %v876 = vpop.f32.mrb[0].mxu0
      %v877 = vpop.f32.mrb[0].mxu0
      %878 = vdwg.mxu0
      %v880 = vsel %vm279, %v260, 0
      %v883 = vsel %vm283, %v276, 0
      %885 = vmatprep.subr.bf16.mxu0 0
      %886 = vmatpush1.bf16.msra.mxu0 %v883
      %887 = vmatprep.subr.bf16.mxu0 0
      %888 = vmatpush1.bf16.msra.mxu0 0
      %889 = vmatprep.subr.bf16.mxu0 0
      %890 = vmatpush1.bf16.msra.mxu0 0
      %891 = vmatprep.subr.bf16.mxu0 0
      %892 = vmatpush1.bf16.msra.mxu0 0
      %893 = vmatprep.subr.bf16.mxu0 0
      %894 = vmatpush1.bf16.msra.mxu0 0
      %895 = vmatprep.subr.bf16.mxu0 0
      %896 = vmatpush1.bf16.msra.mxu0 0
      %897 = vmatprep.subr.bf16.mxu0 0
      %898 = vmatpush1.bf16.msra.mxu0 0
      %899 = vmatprep.subr.bf16.mxu0 0
      %900 = vmatpush1.bf16.msra.mxu0 0
      %901 = vmatprep.subr.bf16.mxu0 0
      %902 = vmatpush1.bf16.msra.mxu0 0
      %903 = vmatprep.subr.bf16.mxu0 0
      %904 = vmatpush1.bf16.msra.mxu0 0
      %905 = vmatprep.subr.bf16.mxu0 0
      %906 = vmatpush1.bf16.msra.mxu0 0
      %907 = vmatprep.subr.bf16.mxu0 0
      %908 = vmatpush1.bf16.msra.mxu0 0
      %909 = vmatprep.subr.bf16.mxu0 0
      %910 = vmatpush1.bf16.msra.mxu0 0
      %911 = vmatprep.subr.bf16.mxu0 0
      %912 = vmatpush1.bf16.msra.mxu0 0
      %913 = vmatprep.subr.bf16.mxu0 0
      %914 = vmatpush1.bf16.msra.mxu0 0
      %915 = vmatprep.subr.bf16.mxu0 0
      %916 = vmatpush1.bf16.msra.mxu0 0
      %917 = vmatprep.mubr.bf16.mxu0 0
      %918 = vmatmul.mubr.bf16.gmra.mrb[0].mxu0 %v880
      %v919 = vpop.f32.mrb[0].mxu0
      %v920 = vadd.f32 0.0, %v919
      %v921 = vpop.f32.mrb[0].mxu0
      %v922 = vpop.f32.mrb[0].mxu0
      %v923 = vpop.f32.mrb[0].mxu0
      %924 = vdwg.mxu0
      %v926 = vsel %vm279, %v261, 0
      %v929 = vsel %vm283, %v277, 0
      %931 = vmatprep.subr.bf16.mxu0 0
      %932 = vmatpush1.bf16.msra.mxu0 %v929
      %933 = vmatprep.subr.bf16.mxu0 0
      %934 = vmatpush1.bf16.msra.mxu0 0
      %935 = vmatprep.subr.bf16.mxu0 0
      %936 = vmatpush1.bf16.msra.mxu0 0
      %937 = vmatprep.subr.bf16.mxu0 0
      %938 = vmatpush1.bf16.msra.mxu0 0
      %939 = vmatprep.subr.bf16.mxu0 0
      %940 = vmatpush1.bf16.msra.mxu0 0
      %941 = vmatprep.subr.bf16.mxu0 0
      %942 = vmatpush1.bf16.msra.mxu0 0
      %943 = vmatprep.subr.bf16.mxu0 0
      %944 = vmatpush1.bf16.msra.mxu0 0
      %945 = vmatprep.subr.bf16.mxu0 0
      %946 = vmatpush1.bf16.msra.mxu0 0
      %947 = vmatprep.subr.bf16.mxu0 0
      %948 = vmatpush1.bf16.msra.mxu0 0
      %949 = vmatprep.subr.bf16.mxu0 0
      %950 = vmatpush1.bf16.msra.mxu0 0
      %951 = vmatprep.subr.bf16.mxu0 0
      %952 = vmatpush1.bf16.msra.mxu0 0
      %953 = vmatprep.subr.bf16.mxu0 0
      %954 = vmatpush1.bf16.msra.mxu0 0
      %955 = vmatprep.subr.bf16.mxu0 0
      %956 = vmatpush1.bf16.msra.mxu0 0
      %957 = vmatprep.subr.bf16.mxu0 0
      %958 = vmatpush1.bf16.msra.mxu0 0
      %959 = vmatprep.subr.bf16.mxu0 0
      %960 = vmatpush1.bf16.msra.mxu0 0
      %961 = vmatprep.subr.bf16.mxu0 0
      %962 = vmatpush1.bf16.msra.mxu0 0
      %963 = vmatprep.mubr.bf16.mxu0 0
      %964 = vmatmul.mubr.bf16.gmra.mrb[0].mxu0 %v926
      %v965 = vpop.f32.mrb[0].mxu0
      %v966 = vadd.f32 0.0, %v965
      %v967 = vpop.f32.mrb[0].mxu0
      %v968 = vpop.f32.mrb[0].mxu0
      %v969 = vpop.f32.mrb[0].mxu0
      %970 = vdwg.mxu0
      %v972 = vsel %vm279, %v262, 0
      %v975 = vsel %vm283, %v278, 0
      %977 = vmatprep.subr.bf16.mxu0 0
      %978 = vmatpush1.bf16.msra.mxu0 %v975
      %979 = vmatprep.subr.bf16.mxu0 0
      %980 = vmatpush1.bf16.msra.mxu0 0
      %981 = vmatprep.subr.bf16.mxu0 0
      %982 = vmatpush1.bf16.msra.mxu0 0
      %983 = vmatprep.subr.bf16.mxu0 0
      %984 = vmatpush1.bf16.msra.mxu0 0
      %985 = vmatprep.subr.bf16.mxu0 0
      %986 = vmatpush1.bf16.msra.mxu0 0
      %987 = vmatprep.subr.bf16.mxu0 0
      %988 = vmatpush1.bf16.msra.mxu0 0
      %989 = vmatprep.subr.bf16.mxu0 0
      %990 = vmatpush1.bf16.msra.mxu0 0
      %991 = vmatprep.subr.bf16.mxu0 0
      %992 = vmatpush1.bf16.msra.mxu0 0
      %993 = vmatprep.subr.bf16.mxu0 0
      %994 = vmatpush1.bf16.msra.mxu0 0
      %995 = vmatprep.subr.bf16.mxu0 0
      %996 = vmatpush1.bf16.msra.mxu0 0
      %997 = vmatprep.subr.bf16.mxu0 0
      %998 = vmatpush1.bf16.msra.mxu0 0
      %999 = vmatprep.subr.bf16.mxu0 0
      %1000 = vmatpush1.bf16.msra.mxu0 0
      %1001 = vmatprep.subr.bf16.mxu0 0
      %1002 = vmatpush1.bf16.msra.mxu0 0
      %1003 = vmatprep.subr.bf16.mxu0 0
      %1004 = vmatpush1.bf16.msra.mxu0 0
      %1005 = vmatprep.subr.bf16.mxu0 0
      %1006 = vmatpush1.bf16.msra.mxu0 0
      %1007 = vmatprep.subr.bf16.mxu0 0
      %1008 = vmatpush1.bf16.msra.mxu0 0
      %1009 = vmatprep.mubr.bf16.mxu0 0
      %1010 = vmatmul.mubr.bf16.gmra.mrb[0].mxu0 %v972
      %v1011 = vpop.f32.mrb[0].mxu0
      %v1012 = vadd.f32 0.0, %v1011
      %v1013 = vpop.f32.mrb[0].mxu0
      %v1014 = vpop.f32.mrb[0].mxu0
      %v1015 = vpop.f32.mrb[0].mxu0
      %1016 = vdwg.mxu0
      %v1017 = vpack.c.bf16 %v368, %v322
      %v1018 = vpack.c.bf16 %v460, %v414
      %v1019 = vpack.c.bf16 %v552, %v506
      %v1020 = vpack.c.bf16 %v644, %v598
      %v1021 = vpack.c.bf16 %v736, %v690
      %v1022 = vpack.c.bf16 %v828, %v782
      %v1023 = vpack.c.bf16 %v920, %v874
      %v1024 = vpack.c.bf16 %v1012, %v966
      %v1025 = vld [vmem:[%s2] sm:$0xf]
      %v1026 = vld [vmem:[%s2 + $0x4] sm:$0xf]
      %v1029 = vunpack.c.l.b16 %v1025
      %v1030 = vunpack.c.l.b16 %v1026
      %v1031 = vpack.c.b16 %v1030, %v1029
      %vm1033 = vcmask 130048
      %v1035 = vsel %vm1033, %v1017, 0
      %v1038 = vsel %vm1033, %v1018, 0
      %v1041 = vsel %vm1033, %v1019, 0
      %v1044 = vsel %vm1033, %v1020, 0
      %v1047 = vsel %vm1033, %v1021, 0
      %v1050 = vsel %vm1033, %v1022, 0
      %v1053 = vsel %vm1033, %v1023, 0
      %v1056 = vsel %vm1033, %v1024, 0
      %1058 = vmatprep.subr.bf16.mxu0 0
      %1059 = vmatpush1.bf16.msra.mxu0 %v1031
      %1060 = vmatprep.subr.bf16.mxu0 0
      %1061 = vmatpush1.bf16.msra.mxu0 0
      %1062 = vmatprep.subr.bf16.mxu0 0
      %1063 = vmatpush1.bf16.msra.mxu0 0
      %1064 = vmatprep.subr.bf16.mxu0 0
      %1065 = vmatpush1.bf16.msra.mxu0 0
      %1066 = vmatprep.subr.bf16.mxu0 0
      %1067 = vmatpush1.bf16.msra.mxu0 0
      %1068 = vmatprep.subr.bf16.mxu0 0
      %1069 = vmatpush1.bf16.msra.mxu0 0
      %1070 = vmatprep.subr.bf16.mxu0 0
      %1071 = vmatpush1.bf16.msra.mxu0 0
      %1072 = vmatprep.subr.bf16.mxu0 0
      %1073 = vmatpush1.bf16.msra.mxu0 0
      %1074 = vmatprep.subr.bf16.mxu0 0
      %1075 = vmatpush1.bf16.msra.mxu0 0
      %1076 = vmatprep.subr.bf16.mxu0 0
      %1077 = vmatpush1.bf16.msra.mxu0 0
      %1078 = vmatprep.subr.bf16.mxu0 0
      %1079 = vmatpush1.bf16.msra.mxu0 0
      %1080 = vmatprep.subr.bf16.mxu0 0
      %1081 = vmatpush1.bf16.msra.mxu0 0
      %1082 = vmatprep.subr.bf16.mxu0 0
      %1083 = vmatpush1.bf16.msra.mxu0 0
      %1084 = vmatprep.subr.bf16.mxu0 0
      %1085 = vmatpush1.bf16.msra.mxu0 0
      %1086 = vmatprep.subr.bf16.mxu0 0
      %1087 = vmatpush1.bf16.msra.mxu0 0
      %1088 = vmatprep.subr.bf16.mxu0 0
      %1089 = vmatpush1.bf16.msra.mxu0 0
      %1090 = vmatprep.mubr.bf16.mxu0 0
      %1091 = vmatmul.mubr.bf16.gmra.mrb[0].mxu0 %v1035
      %v1092 = vpop.f32.mrb[0].mxu0
      %v1093 = vadd.f32 0.0, %v1092
      %v1094 = vpop.f32.mrb[0].mxu0
      %v1095 = vpop.f32.mrb[0].mxu0
      %v1096 = vadd.f32 0.0, %v1095
      %v1097 = vpop.f32.mrb[0].mxu0
      %1098 = vmatprep.mubr.bf16.mxu0 0
      %1099 = vmatmul.mubr.bf16.gmra.mrb[0].mxu0 %v1038
      %v1100 = vpop.f32.mrb[0].mxu0
      %v1101 = vadd.f32 0.0, %v1100
      %v1102 = vpop.f32.mrb[0].mxu0
      %v1103 = vpop.f32.mrb[0].mxu0
      %v1104 = vadd.f32 0.0, %v1103
      %v1105 = vpop.f32.mrb[0].mxu0
      %1106 = vmatprep.mubr.bf16.mxu0 0
      %1107 = vmatmul.mubr.bf16.gmra.mrb[0].mxu0 %v1041
      %v1108 = vpop.f32.mrb[0].mxu0
      %v1109 = vadd.f32 0.0, %v1108
      %v1110 = vpop.f32.mrb[0].mxu0
      %v1111 = vpop.f32.mrb[0].mxu0
      %v1112 = vadd.f32 0.0, %v1111
      %v1113 = vpop.f32.mrb[0].mxu0
      %1114 = vmatprep.mubr.bf16.mxu0 0
      %1115 = vmatmul.mubr.bf16.gmra.mrb[0].mxu0 %v1044
      %v1116 = vpop.f32.mrb[0].mxu0
      %v1117 = vadd.f32 0.0, %v1116
      %v1118 = vpop.f32.mrb[0].mxu0
      %v1119 = vpop.f32.mrb[0].mxu0
      %v1120 = vadd.f32 0.0, %v1119
      %v1121 = vpop.f32.mrb[0].mxu0
      %1122 = vmatprep.mubr.bf16.mxu0 0
      %1123 = vmatmul.mubr.bf16.gmra.mrb[0].mxu0 %v1047
      %v1124 = vpop.f32.mrb[0].mxu0
      %v1125 = vadd.f32 0.0, %v1124
      %v1126 = vpop.f32.mrb[0].mxu0
      %v1127 = vpop.f32.mrb[0].mxu0
      %v1128 = vadd.f32 0.0, %v1127
      %v1129 = vpop.f32.mrb[0].mxu0
      %1130 = vmatprep.mubr.bf16.mxu0 0
      %1131 = vmatmul.mubr.bf16.gmra.mrb[0].mxu0 %v1050
      %v1132 = vpop.f32.mrb[0].mxu0
      %v1133 = vadd.f32 0.0, %v1132
      %v1134 = vpop.f32.mrb[0].mxu0
      %v1135 = vpop.f32.mrb[0].mxu0
      %v1136 = vadd.f32 0.0, %v1135
      %v1137 = vpop.f32.mrb[0].mxu0
      %1138 = vmatprep.mubr.bf16.mxu0 0
      %1139 = vmatmul.mubr.bf16.gmra.mrb[0].mxu0 %v1053
      %v1140 = vpop.f32.mrb[0].mxu0
      %v1141 = vadd.f32 0.0, %v1140
      %v1142 = vpop.f32.mrb[0].mxu0
      %v1143 = vpop.f32.mrb[0].mxu0
      %v1144 = vadd.f32 0.0, %v1143
      %v1145 = vpop.f32.mrb[0].mxu0
      %1146 = vmatprep.mubr.bf16.mxu0 0
      %1147 = vmatmul.mubr.bf16.gmra.mrb[0].mxu0 %v1056
      %v1148 = vpop.f32.mrb[0].mxu0
      %v1149 = vadd.f32 0.0, %v1148
      %v1150 = vpop.f32.mrb[0].mxu0
      %v1151 = vpop.f32.mrb[0].mxu0
      %v1152 = vadd.f32 0.0, %v1151
      %v1153 = vpop.f32.mrb[0].mxu0
      %1154 = vdwg.mxu0
      %v1155 = vmax.f32 %v1093, 0.0
      %v1156 = vmax.f32 %v1096, 0.0
      %v1157 = vmax.f32 %v1101, 0.0
      %v1158 = vmax.f32 %v1104, 0.0
      %v1159 = vmax.f32 %v1109, 0.0
      %v1160 = vmax.f32 %v1112, 0.0
      %v1161 = vmax.f32 %v1117, 0.0
      %v1162 = vmax.f32 %v1120, 0.0
      %v1163 = vmax.f32 %v1125, 0.0
      %v1164 = vmax.f32 %v1128, 0.0
      %v1165 = vmax.f32 %v1133, 0.0
      %v1166 = vmax.f32 %v1136, 0.0
      %v1167 = vmax.f32 %v1141, 0.0
      %v1168 = vmax.f32 %v1144, 0.0
      %v1169 = vmax.f32 %v1149, 0.0
      %v1170 = vmax.f32 %v1152, 0.0
      %vm1171 = vcmask 261120
      %v1172 = vsel %vm1171, %v1155, 0.0
      %v1173 = vrot.slane %v1172, 4
      %v1174 = vadd.f32 %v1172, %v1173
      %v1175 = vrot.slane %v1174, 2
      %v1176 = vadd.f32 %v1174, %v1175
      %v1177 = vrot.slane %v1176, 1
      %v1178 = vadd.f32 %v1176, %v1177
      %v1179 = vsel %vm1171, %v1156, 0.0
      %v1180 = vrot.slane %v1179, 4
      %v1181 = vadd.f32 %v1179, %v1180
      %v1182 = vrot.slane %v1181, 2
      %v1183 = vadd.f32 %v1181, %v1182
      %v1184 = vrot.slane %v1183, 1
      %v1185 = vadd.f32 %v1183, %v1184
      %v1186 = vsel %vm1171, %v1157, 0.0
      %v1187 = vrot.slane %v1186, 4
      %v1188 = vadd.f32 %v1186, %v1187
      %v1189 = vrot.slane %v1188, 2
      %v1190 = vadd.f32 %v1188, %v1189
      %v1191 = vrot.slane %v1190, 1
      %v1192 = vadd.f32 %v1190, %v1191
      %v1193 = vsel %vm1171, %v1158, 0.0
      %v1194 = vrot.slane %v1193, 4
      %v1195 = vadd.f32 %v1193, %v1194
      %v1196 = vrot.slane %v1195, 2
      %v1197 = vadd.f32 %v1195, %v1196
      %v1198 = vrot.slane %v1197, 1
      %v1199 = vadd.f32 %v1197, %v1198
      %v1200 = vsel %vm1171, %v1159, 0.0
      %v1201 = vrot.slane %v1200, 4
      %v1202 = vadd.f32 %v1200, %v1201
      %v1203 = vrot.slane %v1202, 2
      %v1204 = vadd.f32 %v1202, %v1203
      %v1205 = vrot.slane %v1204, 1
      %v1206 = vadd.f32 %v1204, %v1205
      %v1207 = vsel %vm1171, %v1160, 0.0
      %v1208 = vrot.slane %v1207, 4
      %v1209 = vadd.f32 %v1207, %v1208
      %v1210 = vrot.slane %v1209, 2
      %v1211 = vadd.f32 %v1209, %v1210
      %v1212 = vrot.slane %v1211, 1
      %v1213 = vadd.f32 %v1211, %v1212
      %v1214 = vsel %vm1171, %v1161, 0.0
      %v1215 = vrot.slane %v1214, 4
      %v1216 = vadd.f32 %v1214, %v1215
      %v1217 = vrot.slane %v1216, 2
      %v1218 = vadd.f32 %v1216, %v1217
      %v1219 = vrot.slane %v1218, 1
      %v1220 = vadd.f32 %v1218, %v1219
      %v1221 = vsel %vm1171, %v1162, 0.0
      %v1222 = vrot.slane %v1221, 4
      %v1223 = vadd.f32 %v1221, %v1222
      %v1224 = vrot.slane %v1223, 2
      %v1225 = vadd.f32 %v1223, %v1224
      %v1226 = vrot.slane %v1225, 1
      %v1227 = vadd.f32 %v1225, %v1226
      %v1228 = vsel %vm1171, %v1163, 0.0
      %v1229 = vrot.slane %v1228, 4
      %v1230 = vadd.f32 %v1228, %v1229
      %v1231 = vrot.slane %v1230, 2
      %v1232 = vadd.f32 %v1230, %v1231
      %v1233 = vrot.slane %v1232, 1
      %v1234 = vadd.f32 %v1232, %v1233
      %v1235 = vsel %vm1171, %v1164, 0.0
      %v1236 = vrot.slane %v1235, 4
      %v1237 = vadd.f32 %v1235, %v1236
      %v1238 = vrot.slane %v1237, 2
      %v1239 = vadd.f32 %v1237, %v1238
      %v1240 = vrot.slane %v1239, 1
      %v1241 = vadd.f32 %v1239, %v1240
      %v1242 = vsel %vm1171, %v1165, 0.0
      %v1243 = vrot.slane %v1242, 4
      %v1244 = vadd.f32 %v1242, %v1243
      %v1245 = vrot.slane %v1244, 2
      %v1246 = vadd.f32 %v1244, %v1245
      %v1247 = vrot.slane %v1246, 1
      %v1248 = vadd.f32 %v1246, %v1247
      %v1249 = vsel %vm1171, %v1166, 0.0
      %v1250 = vrot.slane %v1249, 4
      %v1251 = vadd.f32 %v1249, %v1250
      %v1252 = vrot.slane %v1251, 2
      %v1253 = vadd.f32 %v1251, %v1252
      %v1254 = vrot.slane %v1253, 1
      %v1255 = vadd.f32 %v1253, %v1254
      %v1256 = vsel %vm1171, %v1167, 0.0
      %v1257 = vrot.slane %v1256, 4
      %v1258 = vadd.f32 %v1256, %v1257
      %v1259 = vrot.slane %v1258, 2
      %v1260 = vadd.f32 %v1258, %v1259
      %v1261 = vrot.slane %v1260, 1
      %v1262 = vadd.f32 %v1260, %v1261
      %v1263 = vsel %vm1171, %v1168, 0.0
      %v1264 = vrot.slane %v1263, 4
      %v1265 = vadd.f32 %v1263, %v1264
      %v1266 = vrot.slane %v1265, 2
      %v1267 = vadd.f32 %v1265, %v1266
      %v1268 = vrot.slane %v1267, 1
      %v1269 = vadd.f32 %v1267, %v1268
      %v1270 = vsel %vm1171, %v1169, 0.0
      %v1271 = vrot.slane %v1270, 4
      %v1272 = vadd.f32 %v1270, %v1271
      %v1273 = vrot.slane %v1272, 2
      %v1274 = vadd.f32 %v1272, %v1273
      %v1275 = vrot.slane %v1274, 1
      %v1276 = vadd.f32 %v1274, %v1275
      %v1277 = vsel %vm1171, %v1170, 0.0
      %v1278 = vrot.slane %v1277, 4
      %v1279 = vadd.f32 %v1277, %v1278
      %v1280 = vrot.slane %v1279, 2
      %v1281 = vadd.f32 %v1279, %v1280
      %v1282 = vrot.slane %v1281, 1
      %v1283 = vadd.f32 %v1281, %v1282
      %vm1300 = vcmask 1041409
      %v1301 = vsel %vm1300, %v1185, %v1178
      %vm1302 = vcmask 1042434
      %v1303 = vsel %vm1302, %v1192, %v1301
      %vm1304 = vcmask 1043459
      %v1305 = vsel %vm1304, %v1199, %v1303
      %vm1306 = vcmask 1044484
      %v1307 = vsel %vm1306, %v1206, %v1305
      %vm1308 = vcmask 1045509
      %v1309 = vsel %vm1308, %v1213, %v1307
      %vm1310 = vcmask 1046534
      %v1311 = vsel %vm1310, %v1220, %v1309
      %vm1312 = vcmask 1047559
      %v1313 = vsel %vm1312, %v1227, %v1311
      %v1314 = vsel %vm1300, %v1241, %v1234
      %v1315 = vsel %vm1302, %v1248, %v1314
      %v1316 = vsel %vm1304, %v1255, %v1315
      %v1317 = vsel %vm1306, %v1262, %v1316
      %v1318 = vsel %vm1308, %v1269, %v1317
      %v1319 = vsel %vm1310, %v1276, %v1318
      %v1320 = vsel %vm1312, %v1283, %v1319
      %1323 = vst.msk [vmem:[%s244] sm:$0xff] %vm1171, %v1313
      %1324 = vst.msk [vmem:[%s244 + $0x8] sm:$0xff] %vm1171, %v1320
      %s1325 = smul.u32 2, %s19
      %p1326 = scmp.lt.s32.totalorder %s18, 1
      %s1327 = scalar_select %p1326, %s18, 1
      %p1328 = scmp.lt.s32.totalorder %s1325, 1
      %s1329 = scalar_select %p1328, %s1325, 1
      %s1330 = smul.addr %s1327, 2
      %s1331 = sadd.s32 %s1329, %s1330
      %s1332 = smul.addr %s1331, 8
      %s1333 = scalar_lea.vmem %s3, %s1332
      // Predicated region
      $region33: #{simsiam_forward.2} parent=31 // pred_check
        %p1334 = pneg %p123
      $region34: #{simsiam_forward.2} parent=31 // pred_check_branch
        %1336 = sbr.rel (%p1334) target = $region36
      $region35: #{simsiam_forward.2} parent=31 // pred_region
        %s1337 = smul.u32 2, %s19
      $region36: #{simsiam_forward.2} parent=31 // pred_fallthru
        _
    $region32: #{simsiam_forward.2} parent=5 // pred_fallthru
      _
    %p1338 = scmp.le.s32.totalorder 2, %s9
    // Predicated region
    $region37: #{simsiam_forward.2} parent=5 // pred_check
      %p1339 = pneg %p1338
    $region38: #{simsiam_forward.2} parent=5 // pred_check_branch
      %1341 = sbr.rel (%p1339) target = $region40
    $region39: #{simsiam_forward.2} parent=5 // pred_region
      %s1342 = ssub.s32 %s9, 2
      // Predicated region
      $region41: #{simsiam_forward.2} parent=39 // pred_check
        %p1343 = pneg %p129
      $region42: #{simsiam_forward.2} parent=39 // pred_check_branch
        %1345 = sbr.rel (%p1343) target = $region44
      $region43: #{simsiam_forward.2} parent=39 // pred_region
        %s1346 = smul.u32 2, %s21
        %p1347 = scmp.lt.s32.totalorder %s20, 1
        %s1348 = scalar_select %p1347, %s20, 1
        %p1349 = scmp.lt.s32.totalorder %s1346, 1
        %s1350 = scalar_select %p1349, %s1346, 1
        %s1351 = smul.addr %s1348, 2
        %s1352 = sadd.s32 %s1350, %s1351
        %s1353 = smul.addr %s1352, 8
        %s1354 = scalar_lea.vmem %s3, %s1353
      $region44: #{simsiam_forward.2} parent=39 // pred_fallthru
        _
    $region40: #{simsiam_forward.2} parent=5 // pred_fallthru
      _
  $region6: #{simsiam_forward.2} parent=0 // loop_footer
    %s13 = sadd.s32 1, %s9
  $region7: #{simsiam_forward.2} parent=0 // loop_footer_branch
    %8 = sbr.rel target = $region3
  $region8: #{simsiam_forward.2} parent=0 // loop_exit
    _

</llo_original>
